<compile_context>
chip_gen: v5e
topology: v5e:2x2
jax: 0.10.0
libtpu: 0.0.40
codegen_flags: <defaults>
</compile_context>

<pallas_src>
import functools

import jax
import jax.numpy as jnp
from jax.experimental import pallas as pl
from jax.experimental.pallas import tpu as pltpu


def _round_up(n, m):
    return (n + m - 1) // m * m


def _rnn_recurrent_kernel(p_ref, whh_ref, y_ref, h_scr, *, ts):
    """Grid = (batch tiles [parallel], time chunks [arbitrary, sequential]).

    p_ref  : (BT, TS, H_pad) f32   precomputed x@W_ih^T + (b_ih+b_hh) for this chunk
    whh_ref: (H_pad, H_pad)        W_hh^T, resident (constant index map)
    y_ref  : (BT, TS, H_pad)       output hidden states (x dtype)
    h_scr  : (BT, H_pad) f32       hidden state carried across time chunks
    """
    c = pl.program_id(1)  # time-chunk index (innermost, sequential)

    # h0 = zeros (matches torch.zeros(1, B, H)); re-zeroed at the start of each
    # batch tile's time loop.
    @pl.when(c == 0)
    def _():
        h_scr[...] = jnp.zeros_like(h_scr)

    h = h_scr[...]                    # (BT, H_pad) f32 carry
    w = whh_ref[...]                  # (H_pad, H_pad) compute dtype (resident)

    # Statically unrolled loop over the TS timesteps of this chunk.
    for s in range(ts):
        pre = p_ref[:, s, :] + jnp.dot(
            h.astype(w.dtype), w, preferred_element_type=jnp.float32
        )
        h = jnp.tanh(pre)             # f32 tanh / f32 carry for accuracy
        y_ref[:, s, :] = h.astype(y_ref.dtype)

    h_scr[...] = h


def rnn_base_forward(x, w_ih, w_hh, b_ih, b_hh, *, ts=16):
    """Equivalent of RNNBase.forward: returns all hidden states y of shape (B, T, H)."""
    B, T, I = x.shape
    H = w_ih.shape[0]
    mm_dtype = x.dtype                # matmul operand dtype (bf16 => full-rate MXU)

    # ---- lane/sublane-dense padded sizes --------------------------------------
    H_pad = _round_up(H, 128)                      # lane dim of h / y
    ts = _round_up(max(int(ts), 1), 16)            # chunk: works for f32 & bf16 tiling
    T_pad = _round_up(T, ts)
    BT = min(_round_up(B, 8), 64)                  # batch tile; >=2 tiles => v7x 2-TC split
    B_pad = _round_up(B, BT)

    x_p = jnp.pad(x, ((0, B_pad - B), (0, T_pad - T), (0, 0)))
    wih_t = jnp.pad(jnp.transpose(w_ih), ((0, 0), (0, H_pad - H)))            # (I, H_pad)
    whh_t = jnp.pad(jnp.transpose(w_hh), ((0, H_pad - H), (0, H_pad - H)))    # (H_pad, H_pad)
    bias = jnp.pad((b_ih + b_hh).astype(jnp.float32), (0, H_pad - H))         # (H_pad,)

    # ---- hoisted input projection: one big parallel matmul (plain XLA) --------
    p = jnp.einsum(
        "bti,ih->bth",
        x_p.astype(mm_dtype),
        wih_t.astype(mm_dtype),
        preferred_element_type=jnp.float32,
    ) + bias                                       # (B_pad, T_pad, H_pad) f32

    nb, nt = B_pad // BT, T_pad // ts
    kernel = functools.partial(_rnn_recurrent_kernel, ts=ts)

    y_pad = pl.pallas_call(
        kernel,
        out_shape=jax.ShapeDtypeStruct((B_pad, T_pad, H_pad), x.dtype),
        grid_spec=pltpu.PrefetchScalarGridSpec(
            num_scalar_prefetch=0,
            grid=(nb, nt),
            in_specs=[
                pl.BlockSpec((BT, ts, H_pad), lambda b, c: (b, c, 0)),   # P chunk
                pl.BlockSpec((H_pad, H_pad), lambda b, c: (0, 0)),       # W_hh^T resident
            ],
            out_specs=pl.BlockSpec((BT, ts, H_pad), lambda b, c: (b, c, 0)),
            scratch_shapes=[pltpu.VMEM((BT, H_pad), jnp.float32)],       # h carry
        ),
        compiler_params=pltpu.CompilerParams(
            # Batch tiles are independent (megacore-parallel on v7x); the time-chunk
            # axis MUST stay sequential ("arbitrary") and innermost for the VMEM carry.
            dimension_semantics=("parallel", "arbitrary"),
        ),
    )(p, whh_t.astype(mm_dtype))

    return y_pad[:B, :T, :H]


def rnn_reference(x, w_ih, w_hh, b_ih, b_hh):
    """Pure-JAX reference (lax.scan) mirroring torch.nn.RNN(batch_first=True).

    Matmul operands in x.dtype, accumulation / carry / tanh in f32 (same numerics
    policy as the kernel). Returns f32."""
    cd = x.dtype
    wiht = jnp.transpose(w_ih).astype(cd)
    whht = jnp.transpose(w_hh).astype(cd)
    b = (b_ih + b_hh).astype(jnp.float32)
    h0 = jnp.zeros((x.shape[0], w_ih.shape[0]), jnp.float32)

    def step(h, x_t):
        pre = (
            jnp.dot(x_t, wiht, preferred_element_type=jnp.float32)
            + jnp.dot(h.astype(cd), whht, preferred_element_type=jnp.float32)
            + b
        )
        h_new = jnp.tanh(pre)
        return h_new, h_new

    _, ys = jax.lax.scan(step, h0, jnp.transpose(x, (1, 0, 2)))
    return jnp.transpose(ys, (1, 0, 2))


if __name__ == "__main__":
    # Small shapes consistent with the module's forward.
    batch, seq_len, input_size, hidden_size = 2, 8, 16, 32

    key = jax.random.PRNGKey(0)
    kx, k1, k2, k3, k4 = jax.random.split(key, 5)

    # Deterministic parameter init mirroring nn.RNN's U(-1/sqrt(H), 1/sqrt(H)).
    bound = 1.0 / jnp.sqrt(jnp.float32(hidden_size))
    w_ih = jax.random.uniform(k1, (hidden_size, input_size), jnp.float32, -bound, bound)
    w_hh = jax.random.uniform(k2, (hidden_size, hidden_size), jnp.float32, -bound, bound)
    b_ih = jax.random.uniform(k3, (hidden_size,), jnp.float32, -bound, bound)
    b_hh = jax.random.uniform(k4, (hidden_size,), jnp.float32, -bound, bound)

    x = jax.random.normal(kx, (batch, seq_len, input_size), jnp.float32)

    fwd = jax.jit(rnn_base_forward, static_argnames=("ts",))

    # --- f32 path (matches PyTorch default dtype): tight tolerance -------------
    y = jax.block_until_ready(fwd(x, w_ih, w_hh, b_ih, b_hh))
    y_ref = rnn_reference(x, w_ih, w_hh, b_ih, b_hh)
    assert y.shape == (batch, seq_len, hidden_size)
    assert jnp.allclose(y, y_ref, atol=1e-5, rtol=1e-5), "f32 mismatch vs. reference scan"

    # --- bf16 MXU fast path: bf16 operands, f32 accumulate/carry ----------------
    x16 = x.astype(jnp.bfloat16)
    y16 = jax.block_until_ready(fwd(x16, w_ih, w_hh, b_ih, b_hh))
    y16_ref = rnn_reference(x16, w_ih, w_hh, b_ih, b_hh)
    assert y16.shape == (batch, seq_len, hidden_size)
    assert jnp.allclose(
        y16.astype(jnp.float32), y16_ref, atol=2e-2, rtol=2e-2
    ), "bf16 mismatch vs. bf16 reference scan"

    print("KERNEL_OK")
</pallas_src>

<mosaic_0001>
module attributes {stable_mosaic.version = 11 : i64} {
  func.func @_rnn_recurrent_kernel(%arg0: i32, %arg1: i32, %arg2: memref<8x16x128xf32, #tpu.memory_space<vmem>>, %arg3: memref<128x128xf32, #tpu.memory_space<vmem>>, %arg4: memref<8x16x128xf32, #tpu.memory_space<vmem>>, %arg5: memref<8x128xf32, #tpu.memory_space<vmem>>) attributes {dimension_semantics = [#tpu.dimension_semantics<parallel>, #tpu.dimension_semantics<arbitrary>], iteration_bounds = array<i64: 1, 1>, scalar_prefetch = 0 : i64, scratch_operands = 1 : i64, tpu.core_type = #tpu.core_type<tc>, window_params = [{transform_indices = @transform_0, window_bounds = array<i64: 8, 16, 128>}, {pipeline_mode = #tpu.pipeline_mode<synchronous>, transform_indices = @transform_1, window_bounds = array<i64: 128, 128>}, {transform_indices = @transform_2, window_bounds = array<i64: 8, 16, 128>}]} {
    %c0_i32 = arith.constant 0 : i32
    %0 = arith.cmpi eq, %arg1, %c0_i32 : i32
    %1 = arith.extui %0 : i1 to i32
    %c0_i32_0 = arith.constant 0 : i32
    %2 = arith.cmpi ne, %1, %c0_i32_0 : i32
    scf.if %2 {
      %cst_102 = arith.constant 0.000000e+00 : f32
      %134 = vector.broadcast %cst_102 : f32 to vector<8x128xf32>
      %c0_103 = arith.constant 0 : index
      %c0_104 = arith.constant 0 : index
      %135 = vector.load %arg5[%c0_103, %c0_104] : memref<8x128xf32, #tpu.memory_space<vmem>>, vector<8x128xf32>
      tpu.vector_store %arg5[%c0_103, %c0_104], %134 {strides = array<i32>} : memref<8x128xf32, #tpu.memory_space<vmem>>, vector<8x128xf32>,
    } else {
    }
    %c0 = arith.constant 0 : index
    %c0_1 = arith.constant 0 : index
    %3 = vector.load %arg5[%c0, %c0_1] : memref<8x128xf32, #tpu.memory_space<vmem>>, vector<8x128xf32>
    %c0_2 = arith.constant 0 : index
    %c0_3 = arith.constant 0 : index
    %4 = vector.load %arg3[%c0_2, %c0_3] : memref<128x128xf32, #tpu.memory_space<vmem>>, vector<128x128xf32>
    %c0_4 = arith.constant 0 : index
    %c0_5 = arith.constant 0 : index
    %c0_6 = arith.constant 0 : index
    %5 = vector.load %arg2[%c0_4, %c0_5, %c0_6] : memref<8x16x128xf32, #tpu.memory_space<vmem>>, vector<8x1x128xf32>
    %6 = vector.shape_cast %5 : vector<8x1x128xf32> to vector<8x128xf32>
    %cst = arith.constant dense<0.000000e+00> : vector<8x128xf32>
    %7 = tpu.matmul %3, %4, %cst {dimension_numbers = #tpu.dot_dimension_numbers<[1], [0], [0], [1], [0, 0, 1, 1], [], []>} : vector<8x128xf32>, vector<128x128xf32>, vector<8x128xf32> -> vector<8x128xf32>
    %8 = arith.addf %6, %7 : vector<8x128xf32>
    %9 = math.tanh %8 : vector<8x128xf32>
    %c0_7 = arith.constant 0 : index
    %c0_8 = arith.constant 0 : index
    %c0_9 = arith.constant 0 : index
    %10 = vector.load %arg4[%c0_7, %c0_8, %c0_9] : memref<8x16x128xf32, #tpu.memory_space<vmem>>, vector<8x1x128xf32>
    %11 = vector.shape_cast %10 : vector<8x1x128xf32> to vector<8x128xf32>
    %12 = vector.shape_cast %9 : vector<8x128xf32> to vector<8x1x128xf32>
    tpu.vector_store %arg4[%c0_7, %c0_8, %c0_9], %12 {strides = array<i32>} : memref<8x16x128xf32, #tpu.memory_space<vmem>>, vector<8x1x128xf32>,
    %c0_10 = arith.constant 0 : index
    %c1 = arith.constant 1 : index
    %c0_11 = arith.constant 0 : index
    %13 = vector.load %arg2[%c0_10, %c1, %c0_11] : memref<8x16x128xf32, #tpu.memory_space<vmem>>, vector<8x1x128xf32>
    %14 = vector.shape_cast %13 : vector<8x1x128xf32> to vector<8x128xf32>
    %cst_12 = arith.constant dense<0.000000e+00> : vector<8x128xf32>
    %15 = tpu.matmul %9, %4, %cst_12 {dimension_numbers = #tpu.dot_dimension_numbers<[1], [0], [0], [1], [0, 0, 1, 1], [], []>} : vector<8x128xf32>, vector<128x128xf32>, vector<8x128xf32> -> vector<8x128xf32>
    %16 = arith.addf %14, %15 : vector<8x128xf32>
    %17 = math.tanh %16 : vector<8x128xf32>
    %c0_13 = arith.constant 0 : index
    %c1_14 = arith.constant 1 : index
    %c0_15 = arith.constant 0 : index
    %18 = vector.load %arg4[%c0_13, %c1_14, %c0_15] : memref<8x16x128xf32, #tpu.memory_space<vmem>>, vector<8x1x128xf32>
    %19 = vector.shape_cast %18 : vector<8x1x128xf32> to vector<8x128xf32>
    %20 = vector.shape_cast %17 : vector<8x128xf32> to vector<8x1x128xf32>
    tpu.vector_store %arg4[%c0_13, %c1_14, %c0_15], %20 {strides = array<i32>} : memref<8x16x128xf32, #tpu.memory_space<vmem>>, vector<8x1x128xf32>,
    %c0_16 = arith.constant 0 : index
    %c2 = arith.constant 2 : index
    %c0_17 = arith.constant 0 : index
    %21 = vector.load %arg2[%c0_16, %c2, %c0_17] : memref<8x16x128xf32, #tpu.memory_space<vmem>>, vector<8x1x128xf32>
    %22 = vector.shape_cast %21 : vector<8x1x128xf32> to vector<8x128xf32>
    %cst_18 = arith.constant dense<0.000000e+00> : vector<8x128xf32>
    %23 = tpu.matmul %17, %4, %cst_18 {dimension_numbers = #tpu.dot_dimension_numbers<[1], [0], [0], [1], [0, 0, 1, 1], [], []>} : vector<8x128xf32>, vector<128x128xf32>, vector<8x128xf32> -> vector<8x128xf32>
    %24 = arith.addf %22, %23 : vector<8x128xf32>
    %25 = math.tanh %24 : vector<8x128xf32>
    %c0_19 = arith.constant 0 : index
    %c2_20 = arith.constant 2 : index
    %c0_21 = arith.constant 0 : index
    %26 = vector.load %arg4[%c0_19, %c2_20, %c0_21] : memref<8x16x128xf32, #tpu.memory_space<vmem>>, vector<8x1x128xf32>
    %27 = vector.shape_cast %26 : vector<8x1x128xf32> to vector<8x128xf32>
    %28 = vector.shape_cast %25 : vector<8x128xf32> to vector<8x1x128xf32>
    tpu.vector_store %arg4[%c0_19, %c2_20, %c0_21], %28 {strides = array<i32>} : memref<8x16x128xf32, #tpu.memory_space<vmem>>, vector<8x1x128xf32>,
    %c0_22 = arith.constant 0 : index
    %c3 = arith.constant 3 : index
    %c0_23 = arith.constant 0 : index
    %29 = vector.load %arg2[%c0_22, %c3, %c0_23] : memref<8x16x128xf32, #tpu.memory_space<vmem>>, vector<8x1x128xf32>
    %30 = vector.shape_cast %29 : vector<8x1x128xf32> to vector<8x128xf32>
    %cst_24 = arith.constant dense<0.000000e+00> : vector<8x128xf32>
    %31 = tpu.matmul %25, %4, %cst_24 {dimension_numbers = #tpu.dot_dimension_numbers<[1], [0], [0], [1], [0, 0, 1, 1], [], []>} : vector<8x128xf32>, vector<128x128xf32>, vector<8x128xf32> -> vector<8x128xf32>
    %32 = arith.addf %30, %31 : vector<8x128xf32>
    %33 = math.tanh %32 : vector<8x128xf32>
    %c0_25 = arith.constant 0 : index
    %c3_26 = arith.constant 3 : index
    %c0_27 = arith.constant 0 : index
    %34 = vector.load %arg4[%c0_25, %c3_26, %c0_27] : memref<8x16x128xf32, #tpu.memory_space<vmem>>, vector<8x1x128xf32>
    %35 = vector.shape_cast %34 : vector<8x1x128xf32> to vector<8x128xf32>
    %36 = vector.shape_cast %33 : vector<8x128xf32> to vector<8x1x128xf32>
    tpu.vector_store %arg4[%c0_25, %c3_26, %c0_27], %36 {strides = array<i32>} : memref<8x16x128xf32, #tpu.memory_space<vmem>>, vector<8x1x128xf32>,
    %c0_28 = arith.constant 0 : index
    %c4 = arith.constant 4 : index
    %c0_29 = arith.constant 0 : index
    %37 = vector.load %arg2[%c0_28, %c4, %c0_29] : memref<8x16x128xf32, #tpu.memory_space<vmem>>, vector<8x1x128xf32>
    %38 = vector.shape_cast %37 : vector<8x1x128xf32> to vector<8x128xf32>
    %cst_30 = arith.constant dense<0.000000e+00> : vector<8x128xf32>
    %39 = tpu.matmul %33, %4, %cst_30 {dimension_numbers = #tpu.dot_dimension_numbers<[1], [0], [0], [1], [0, 0, 1, 1], [], []>} : vector<8x128xf32>, vector<128x128xf32>, vector<8x128xf32> -> vector<8x128xf32>
    %40 = arith.addf %38, %39 : vector<8x128xf32>
    %41 = math.tanh %40 : vector<8x128xf32>
    %c0_31 = arith.constant 0 : index
    %c4_32 = arith.constant 4 : index
    %c0_33 = arith.constant 0 : index
    %42 = vector.load %arg4[%c0_31, %c4_32, %c0_33] : memref<8x16x128xf32, #tpu.memory_space<vmem>>, vector<8x1x128xf32>
    %43 = vector.shape_cast %42 : vector<8x1x128xf32> to vector<8x128xf32>
    %44 = vector.shape_cast %41 : vector<8x128xf32> to vector<8x1x128xf32>
    tpu.vector_store %arg4[%c0_31, %c4_32, %c0_33], %44 {strides = array<i32>} : memref<8x16x128xf32, #tpu.memory_space<vmem>>, vector<8x1x128xf32>,
    %c0_34 = arith.constant 0 : index
    %c5 = arith.constant 5 : index
    %c0_35 = arith.constant 0 : index
    %45 = vector.load %arg2[%c0_34, %c5, %c0_35] : memref<8x16x128xf32, #tpu.memory_space<vmem>>, vector<8x1x128xf32>
    %46 = vector.shape_cast %45 : vector<8x1x128xf32> to vector<8x128xf32>
    %cst_36 = arith.constant dense<0.000000e+00> : vector<8x128xf32>
    %47 = tpu.matmul %41, %4, %cst_36 {dimension_numbers = #tpu.dot_dimension_numbers<[1], [0], [0], [1], [0, 0, 1, 1], [], []>} : vector<8x128xf32>, vector<128x128xf32>, vector<8x128xf32> -> vector<8x128xf32>
    %48 = arith.addf %46, %47 : vector<8x128xf32>
    %49 = math.tanh %48 : vector<8x128xf32>
    %c0_37 = arith.constant 0 : index
    %c5_38 = arith.constant 5 : index
    %c0_39 = arith.constant 0 : index
    %50 = vector.load %arg4[%c0_37, %c5_38, %c0_39] : memref<8x16x128xf32, #tpu.memory_space<vmem>>, vector<8x1x128xf32>
    %51 = vector.shape_cast %50 : vector<8x1x128xf32> to vector<8x128xf32>
    %52 = vector.shape_cast %49 : vector<8x128xf32> to vector<8x1x128xf32>
    tpu.vector_store %arg4[%c0_37, %c5_38, %c0_39], %52 {strides = array<i32>} : memref<8x16x128xf32, #tpu.memory_space<vmem>>, vector<8x1x128xf32>,
    %c0_40 = arith.constant 0 : index
    %c6 = arith.constant 6 : index
    %c0_41 = arith.constant 0 : index
    %53 = vector.load %arg2[%c0_40, %c6, %c0_41] : memref<8x16x128xf32, #tpu.memory_space<vmem>>, vector<8x1x128xf32>
    %54 = vector.shape_cast %53 : vector<8x1x128xf32> to vector<8x128xf32>
    %cst_42 = arith.constant dense<0.000000e+00> : vector<8x128xf32>
    %55 = tpu.matmul %49, %4, %cst_42 {dimension_numbers = #tpu.dot_dimension_numbers<[1], [0], [0], [1], [0, 0, 1, 1], [], []>} : vector<8x128xf32>, vector<128x128xf32>, vector<8x128xf32> -> vector<8x128xf32>
    %56 = arith.addf %54, %55 : vector<8x128xf32>
    %57 = math.tanh %56 : vector<8x128xf32>
    %c0_43 = arith.constant 0 : index
    %c6_44 = arith.constant 6 : index
    %c0_45 = arith.constant 0 : index
    %58 = vector.load %arg4[%c0_43, %c6_44, %c0_45] : memref<8x16x128xf32, #tpu.memory_space<vmem>>, vector<8x1x128xf32>
    %59 = vector.shape_cast %58 : vector<8x1x128xf32> to vector<8x128xf32>
    %60 = vector.shape_cast %57 : vector<8x128xf32> to vector<8x1x128xf32>
    tpu.vector_store %arg4[%c0_43, %c6_44, %c0_45], %60 {strides = array<i32>} : memref<8x16x128xf32, #tpu.memory_space<vmem>>, vector<8x1x128xf32>,
    %c0_46 = arith.constant 0 : index
    %c7 = arith.constant 7 : index
    %c0_47 = arith.constant 0 : index
    %61 = vector.load %arg2[%c0_46, %c7, %c0_47] : memref<8x16x128xf32, #tpu.memory_space<vmem>>, vector<8x1x128xf32>
    %62 = vector.shape_cast %61 : vector<8x1x128xf32> to vector<8x128xf32>
    %cst_48 = arith.constant dense<0.000000e+00> : vector<8x128xf32>
    %63 = tpu.matmul %57, %4, %cst_48 {dimension_numbers = #tpu.dot_dimension_numbers<[1], [0], [0], [1], [0, 0, 1, 1], [], []>} : vector<8x128xf32>, vector<128x128xf32>, vector<8x128xf32> -> vector<8x128xf32>
    %64 = arith.addf %62, %63 : vector<8x128xf32>
    %65 = math.tanh %64 : vector<8x128xf32>
    %c0_49 = arith.constant 0 : index
    %c7_50 = arith.constant 7 : index
    %c0_51 = arith.constant 0 : index
    %66 = vector.load %arg4[%c0_49, %c7_50, %c0_51] : memref<8x16x128xf32, #tpu.memory_space<vmem>>, vector<8x1x128xf32>
    %67 = vector.shape_cast %66 : vector<8x1x128xf32> to vector<8x128xf32>
    %68 = vector.shape_cast %65 : vector<8x128xf32> to vector<8x1x128xf32>
    tpu.vector_store %arg4[%c0_49, %c7_50, %c0_51], %68 {strides = array<i32>} : memref<8x16x128xf32, #tpu.memory_space<vmem>>, vector<8x1x128xf32>,
    %c0_52 = arith.constant 0 : index
    %c8 = arith.constant 8 : index
    %c0_53 = arith.constant 0 : index
    %69 = vector.load %arg2[%c0_52, %c8, %c0_53] : memref<8x16x128xf32, #tpu.memory_space<vmem>>, vector<8x1x128xf32>
    %70 = vector.shape_cast %69 : vector<8x1x128xf32> to vector<8x128xf32>
    %cst_54 = arith.constant dense<0.000000e+00> : vector<8x128xf32>
    %71 = tpu.matmul %65, %4, %cst_54 {dimension_numbers = #tpu.dot_dimension_numbers<[1], [0], [0], [1], [0, 0, 1, 1], [], []>} : vector<8x128xf32>, vector<128x128xf32>, vector<8x128xf32> -> vector<8x128xf32>
    %72 = arith.addf %70, %71 : vector<8x128xf32>
    %73 = math.tanh %72 : vector<8x128xf32>
    %c0_55 = arith.constant 0 : index
    %c8_56 = arith.constant 8 : index
    %c0_57 = arith.constant 0 : index
    %74 = vector.load %arg4[%c0_55, %c8_56, %c0_57] : memref<8x16x128xf32, #tpu.memory_space<vmem>>, vector<8x1x128xf32>
    %75 = vector.shape_cast %74 : vector<8x1x128xf32> to vector<8x128xf32>
    %76 = vector.shape_cast %73 : vector<8x128xf32> to vector<8x1x128xf32>
    tpu.vector_store %arg4[%c0_55, %c8_56, %c0_57], %76 {strides = array<i32>} : memref<8x16x128xf32, #tpu.memory_space<vmem>>, vector<8x1x128xf32>,
    %c0_58 = arith.constant 0 : index
    %c9 = arith.constant 9 : index
    %c0_59 = arith.constant 0 : index
    %77 = vector.load %arg2[%c0_58, %c9, %c0_59] : memref<8x16x128xf32, #tpu.memory_space<vmem>>, vector<8x1x128xf32>
    %78 = vector.shape_cast %77 : vector<8x1x128xf32> to vector<8x128xf32>
    %cst_60 = arith.constant dense<0.000000e+00> : vector<8x128xf32>
    %79 = tpu.matmul %73, %4, %cst_60 {dimension_numbers = #tpu.dot_dimension_numbers<[1], [0], [0], [1], [0, 0, 1, 1], [], []>} : vector<8x128xf32>, vector<128x128xf32>, vector<8x128xf32> -> vector<8x128xf32>
    %80 = arith.addf %78, %79 : vector<8x128xf32>
    %81 = math.tanh %80 : vector<8x128xf32>
    %c0_61 = arith.constant 0 : index
    %c9_62 = arith.constant 9 : index
    %c0_63 = arith.constant 0 : index
    %82 = vector.load %arg4[%c0_61, %c9_62, %c0_63] : memref<8x16x128xf32, #tpu.memory_space<vmem>>, vector<8x1x128xf32>
    %83 = vector.shape_cast %82 : vector<8x1x128xf32> to vector<8x128xf32>
    %84 = vector.shape_cast %81 : vector<8x128xf32> to vector<8x1x128xf32>
    tpu.vector_store %arg4[%c0_61, %c9_62, %c0_63], %84 {strides = array<i32>} : memref<8x16x128xf32, #tpu.memory_space<vmem>>, vector<8x1x128xf32>,
    %c0_64 = arith.constant 0 : index
    %c10 = arith.constant 10 : index
    %c0_65 = arith.constant 0 : index
    %85 = vector.load %arg2[%c0_64, %c10, %c0_65] : memref<8x16x128xf32, #tpu.memory_space<vmem>>, vector<8x1x128xf32>
    %86 = vector.shape_cast %85 : vector<8x1x128xf32> to vector<8x128xf32>
    %cst_66 = arith.constant dense<0.000000e+00> : vector<8x128xf32>
    %87 = tpu.matmul %81, %4, %cst_66 {dimension_numbers = #tpu.dot_dimension_numbers<[1], [0], [0], [1], [0, 0, 1, 1], [], []>} : vector<8x128xf32>, vector<128x128xf32>, vector<8x128xf32> -> vector<8x128xf32>
    %88 = arith.addf %86, %87 : vector<8x128xf32>
    %89 = math.tanh %88 : vector<8x128xf32>
    %c0_67 = arith.constant 0 : index
    %c10_68 = arith.constant 10 : index
    %c0_69 = arith.constant 0 : index
    %90 = vector.load %arg4[%c0_67, %c10_68, %c0_69] : memref<8x16x128xf32, #tpu.memory_space<vmem>>, vector<8x1x128xf32>
    %91 = vector.shape_cast %90 : vector<8x1x128xf32> to vector<8x128xf32>
    %92 = vector.shape_cast %89 : vector<8x128xf32> to vector<8x1x128xf32>
    tpu.vector_store %arg4[%c0_67, %c10_68, %c0_69], %92 {strides = array<i32>} : memref<8x16x128xf32, #tpu.memory_space<vmem>>, vector<8x1x128xf32>,
    %c0_70 = arith.constant 0 : index
    %c11 = arith.constant 11 : index
    %c0_71 = arith.constant 0 : index
    %93 = vector.load %arg2[%c0_70, %c11, %c0_71] : memref<8x16x128xf32, #tpu.memory_space<vmem>>, vector<8x1x128xf32>
    %94 = vector.shape_cast %93 : vector<8x1x128xf32> to vector<8x128xf32>
    %cst_72 = arith.constant dense<0.000000e+00> : vector<8x128xf32>
    %95 = tpu.matmul %89, %4, %cst_72 {dimension_numbers = #tpu.dot_dimension_numbers<[1], [0], [0], [1], [0, 0, 1, 1], [], []>} : vector<8x128xf32>, vector<128x128xf32>, vector<8x128xf32> -> vector<8x128xf32>
    %96 = arith.addf %94, %95 : vector<8x128xf32>
    %97 = math.tanh %96 : vector<8x128xf32>
    %c0_73 = arith.constant 0 : index
    %c11_74 = arith.constant 11 : index
    %c0_75 = arith.constant 0 : index
    %98 = vector.load %arg4[%c0_73, %c11_74, %c0_75] : memref<8x16x128xf32, #tpu.memory_space<vmem>>, vector<8x1x128xf32>
    %99 = vector.shape_cast %98 : vector<8x1x128xf32> to vector<8x128xf32>
    %100 = vector.shape_cast %97 : vector<8x128xf32> to vector<8x1x128xf32>
    tpu.vector_store %arg4[%c0_73, %c11_74, %c0_75], %100 {strides = array<i32>} : memref<8x16x128xf32, #tpu.memory_space<vmem>>, vector<8x1x128xf32>,
    %c0_76 = arith.constant 0 : index
    %c12 = arith.constant 12 : index
    %c0_77 = arith.constant 0 : index
    %101 = vector.load %arg2[%c0_76, %c12, %c0_77] : memref<8x16x128xf32, #tpu.memory_space<vmem>>, vector<8x1x128xf32>
    %102 = vector.shape_cast %101 : vector<8x1x128xf32> to vector<8x128xf32>
    %cst_78 = arith.constant dense<0.000000e+00> : vector<8x128xf32>
    %103 = tpu.matmul %97, %4, %cst_78 {dimension_numbers = #tpu.dot_dimension_numbers<[1], [0], [0], [1], [0, 0, 1, 1], [], []>} : vector<8x128xf32>, vector<128x128xf32>, vector<8x128xf32> -> vector<8x128xf32>
    %104 = arith.addf %102, %103 : vector<8x128xf32>
    %105 = math.tanh %104 : vector<8x128xf32>
    %c0_79 = arith.constant 0 : index
    %c12_80 = arith.constant 12 : index
    %c0_81 = arith.constant 0 : index
    %106 = vector.load %arg4[%c0_79, %c12_80, %c0_81] : memref<8x16x128xf32, #tpu.memory_space<vmem>>, vector<8x1x128xf32>
    %107 = vector.shape_cast %106 : vector<8x1x128xf32> to vector<8x128xf32>
    %108 = vector.shape_cast %105 : vector<8x128xf32> to vector<8x1x128xf32>
    tpu.vector_store %arg4[%c0_79, %c12_80, %c0_81], %108 {strides = array<i32>} : memref<8x16x128xf32, #tpu.memory_space<vmem>>, vector<8x1x128xf32>,
    %c0_82 = arith.constant 0 : index
    %c13 = arith.constant 13 : index
    %c0_83 = arith.constant 0 : index
    %109 = vector.load %arg2[%c0_82, %c13, %c0_83] : memref<8x16x128xf32, #tpu.memory_space<vmem>>, vector<8x1x128xf32>
    %110 = vector.shape_cast %109 : vector<8x1x128xf32> to vector<8x128xf32>
    %cst_84 = arith.constant dense<0.000000e+00> : vector<8x128xf32>
    %111 = tpu.matmul %105, %4, %cst_84 {dimension_numbers = #tpu.dot_dimension_numbers<[1], [0], [0], [1], [0, 0, 1, 1], [], []>} : vector<8x128xf32>, vector<128x128xf32>, vector<8x128xf32> -> vector<8x128xf32>
    %112 = arith.addf %110, %111 : vector<8x128xf32>
    %113 = math.tanh %112 : vector<8x128xf32>
    %c0_85 = arith.constant 0 : index
    %c13_86 = arith.constant 13 : index
    %c0_87 = arith.constant 0 : index
    %114 = vector.load %arg4[%c0_85, %c13_86, %c0_87] : memref<8x16x128xf32, #tpu.memory_space<vmem>>, vector<8x1x128xf32>
    %115 = vector.shape_cast %114 : vector<8x1x128xf32> to vector<8x128xf32>
    %116 = vector.shape_cast %113 : vector<8x128xf32> to vector<8x1x128xf32>
    tpu.vector_store %arg4[%c0_85, %c13_86, %c0_87], %116 {strides = array<i32>} : memref<8x16x128xf32, #tpu.memory_space<vmem>>, vector<8x1x128xf32>,
    %c0_88 = arith.constant 0 : index
    %c14 = arith.constant 14 : index
    %c0_89 = arith.constant 0 : index
    %117 = vector.load %arg2[%c0_88, %c14, %c0_89] : memref<8x16x128xf32, #tpu.memory_space<vmem>>, vector<8x1x128xf32>
    %118 = vector.shape_cast %117 : vector<8x1x128xf32> to vector<8x128xf32>
    %cst_90 = arith.constant dense<0.000000e+00> : vector<8x128xf32>
    %119 = tpu.matmul %113, %4, %cst_90 {dimension_numbers = #tpu.dot_dimension_numbers<[1], [0], [0], [1], [0, 0, 1, 1], [], []>} : vector<8x128xf32>, vector<128x128xf32>, vector<8x128xf32> -> vector<8x128xf32>
    %120 = arith.addf %118, %119 : vector<8x128xf32>
    %121 = math.tanh %120 : vector<8x128xf32>
    %c0_91 = arith.constant 0 : index
    %c14_92 = arith.constant 14 : index
    %c0_93 = arith.constant 0 : index
    %122 = vector.load %arg4[%c0_91, %c14_92, %c0_93] : memref<8x16x128xf32, #tpu.memory_space<vmem>>, vector<8x1x128xf32>
    %123 = vector.shape_cast %122 : vector<8x1x128xf32> to vector<8x128xf32>
    %124 = vector.shape_cast %121 : vector<8x128xf32> to vector<8x1x128xf32>
    tpu.vector_store %arg4[%c0_91, %c14_92, %c0_93], %124 {strides = array<i32>} : memref<8x16x128xf32, #tpu.memory_space<vmem>>, vector<8x1x128xf32>,
    %c0_94 = arith.constant 0 : index
    %c15 = arith.constant 15 : index
    %c0_95 = arith.constant 0 : index
    %125 = vector.load %arg2[%c0_94, %c15, %c0_95] : memref<8x16x128xf32, #tpu.memory_space<vmem>>, vector<8x1x128xf32>
    %126 = vector.shape_cast %125 : vector<8x1x128xf32> to vector<8x128xf32>
    %cst_96 = arith.constant dense<0.000000e+00> : vector<8x128xf32>
    %127 = tpu.matmul %121, %4, %cst_96 {dimension_numbers = #tpu.dot_dimension_numbers<[1], [0], [0], [1], [0, 0, 1, 1], [], []>} : vector<8x128xf32>, vector<128x128xf32>, vector<8x128xf32> -> vector<8x128xf32>
    %128 = arith.addf %126, %127 : vector<8x128xf32>
    %129 = math.tanh %128 : vector<8x128xf32>
    %c0_97 = arith.constant 0 : index
    %c15_98 = arith.constant 15 : index
    %c0_99 = arith.constant 0 : index
    %130 = vector.load %arg4[%c0_97, %c15_98, %c0_99] : memref<8x16x128xf32, #tpu.memory_space<vmem>>, vector<8x1x128xf32>
    %131 = vector.shape_cast %130 : vector<8x1x128xf32> to vector<8x128xf32>
    %132 = vector.shape_cast %129 : vector<8x128xf32> to vector<8x1x128xf32>
    tpu.vector_store %arg4[%c0_97, %c15_98, %c0_99], %132 {strides = array<i32>} : memref<8x16x128xf32, #tpu.memory_space<vmem>>, vector<8x1x128xf32>,
    %c0_100 = arith.constant 0 : index
    %c0_101 = arith.constant 0 : index
    %133 = vector.load %arg5[%c0_100, %c0_101] : memref<8x128xf32, #tpu.memory_space<vmem>>, vector<8x128xf32>
    tpu.vector_store %arg5[%c0_100, %c0_101], %129 {strides = array<i32>} : memref<8x128xf32, #tpu.memory_space<vmem>>, vector<8x128xf32>,
    return
  }
  func.func @transform_0(%arg0: i32, %arg1: i32) -> (i32, i32, i32) {
    %c0_i32 = arith.constant 0 : i32
    %c0_i32_0 = arith.constant 0 : i32
    return %arg0, %arg1, %c0_i32 : i32, i32, i32
  }
  func.func @transform_1(%arg0: i32, %arg1: i32) -> (i32, i32) {
    %c0_i32 = arith.constant 0 : i32
    %c0_i32_0 = arith.constant 0 : i32
    %c0_i32_1 = arith.constant 0 : i32
    return %c0_i32, %c0_i32_0 : i32, i32
  }
  func.func @transform_2(%arg0: i32, %arg1: i32) -> (i32, i32, i32) {
    %c0_i32 = arith.constant 0 : i32
    %c0_i32_0 = arith.constant 0 : i32
    return %arg0, %arg1, %c0_i32 : i32, i32, i32
  }
}

</mosaic_0001>

<llo_original>
// kernel: rnn_base_forward.1
$region0: #{rnn_base_forward.1}
  #allocation0 [shape = 'u32[]', space=smem, size = 0x4, offset = 0x4, fixed_abs, tag = 'smem constant byte address 0x4 - core index']
  #allocation1 [shape = 'u32[72,128]{1,0:T(1,128)}', space=vmem, size = 0x9000, scoped, tag = 'internal scratch']
  #allocation2 [shape = 'f32[8,128]{1,0:T(8,128)}', space=vmem, size = 0x1000, scoped, tag = 'scratch operand']
  %s0 = inlined_call_operand.vmem [shape: f32[8,16,128], index: 0, kind: input, shape index: {}]
  %s1 = inlined_call_operand.vmem [shape: f32[128,128], index: 1, kind: input, shape index: {}]
  %s2 = inlined_call_operand.vmem [shape: f32[8,16,128], index: 2, kind: output, shape index: {}]
  %s3 = sld [smem:[#allocation0]]
  $region22: #{rnn_base_forward.1} parent=0
    _
  %s5 = ssub.s32 1, %s3
  %s6 = scalar_select 0, %s5, %s3
  // Predicated region
  $region2: #{rnn_base_forward.1} parent=0 // pred_check
    _
  $region3: #{rnn_base_forward.1} parent=0 // pred_check_branch
    %8 = sbr.rel (0) target = $region5
  $region4: #{rnn_base_forward.1} parent=0 // pred_region
    _
  $region5: #{rnn_base_forward.1} parent=0 // pred_fallthru
    _
  // Predicated region
  $region6: #{rnn_base_forward.1} parent=0 // pred_check
    _
  $region7: #{rnn_base_forward.1} parent=0 // pred_check_branch
    %10 = sbr.rel (0) target = $region9
  $region8: #{rnn_base_forward.1} parent=0 // pred_region
    _
  $region9: #{rnn_base_forward.1} parent=0 // pred_fallthru
    _
  %p11 = scmp.eq.s32.totalorder 0, 0
  // Predicated region
  $region10: #{rnn_base_forward.1} parent=0 // pred_check
    %p12 = pneg %p11
  $region11: #{rnn_base_forward.1} parent=0 // pred_check_branch
    %14 = sbr.rel (%p12) target = $region13
  $region12: #{rnn_base_forward.1} parent=0 // pred_region
    %15 = vst [vmem:[#allocation2] sm:$0xff] 0.0
  $region13: #{rnn_base_forward.1} parent=0 // pred_fallthru
    _
  %v16 = vld [vmem:[#allocation2] sm:$0xff]
  %v17 = vld [vmem:[%s1] sm:$0xff]
  %v18 = vld [vmem:[%s1 + $0x8] sm:$0xff]
  %v19 = vld [vmem:[%s1 + $0x10] sm:$0xff]
  %v20 = vld [vmem:[%s1 + $0x18] sm:$0xff]
  %v21 = vld [vmem:[%s1 + $0x20] sm:$0xff]
  %v22 = vld [vmem:[%s1 + $0x28] sm:$0xff]
  %v23 = vld [vmem:[%s1 + $0x30] sm:$0xff]
  %v24 = vld [vmem:[%s1 + $0x38] sm:$0xff]
  %v25 = vld [vmem:[%s1 + $0x40] sm:$0xff]
  %v26 = vld [vmem:[%s1 + $0x48] sm:$0xff]
  %v27 = vld [vmem:[%s1 + $0x50] sm:$0xff]
  %v28 = vld [vmem:[%s1 + $0x58] sm:$0xff]
  %v29 = vld [vmem:[%s1 + $0x60] sm:$0xff]
  %v30 = vld [vmem:[%s1 + $0x68] sm:$0xff]
  %v31 = vld [vmem:[%s1 + $0x70] sm:$0xff]
  %v32 = vld [vmem:[%s1 + $0x78] sm:$0xff]
  %v33 = vld [vmem:[%s0] sm:$0x1]
  %v34 = vld [vmem:[%s0 + $0x10] sm:$0x1]
  %v35 = vld [vmem:[%s0 + $0x20] sm:$0x1]
  %v36 = vld [vmem:[%s0 + $0x30] sm:$0x1]
  %v37 = vld [vmem:[%s0 + $0x40] sm:$0x1]
  %v38 = vld [vmem:[%s0 + $0x50] sm:$0x1]
  %v39 = vld [vmem:[%s0 + $0x60] sm:$0x1]
  %v40 = vld [vmem:[%s0 + $0x70] sm:$0x1]
  %41 = vmatpush.msra.mxu0 %v32
  %42 = vmatpush.msra.mxu0 %v31
  %43 = vmatpush.msra.mxu0 %v30
  %44 = vmatpush.msra.mxu0 %v29
  %45 = vmatpush.msra.mxu0 %v28
  %46 = vmatpush.msra.mxu0 %v27
  %47 = vmatpush.msra.mxu0 %v26
  %48 = vmatpush.msra.mxu0 %v25
  %49 = vmatpush.msra.mxu0 %v24
  %50 = vmatpush.msra.mxu0 %v23
  %51 = vmatpush.msra.mxu0 %v22
  %52 = vmatpush.msra.mxu0 %v21
  %53 = vmatpush.msra.mxu0 %v20
  %54 = vmatpush.msra.mxu0 %v19
  %55 = vmatpush.msra.mxu0 %v18
  %56 = vmatpush.msra.mxu0 %v17
  %57 = vmatmul.f32.gmra.mxu0 %v16
  %v58 = vpop.f32.mrf.mxu0
  %v59 = vadd.f32 0.0, %v58
  %60 = vdwg.mxu0
  %v62 = vrot.slane %v59, 1
  %v63 = vrot.slane %v59, 2
  %v64 = vrot.slane %v59, 3
  %v65 = vrot.slane %v59, 4
  %v66 = vrot.slane %v59, 5
  %v67 = vrot.slane %v59, 6
  %v68 = vrot.slane %v59, 7
  %v77 = vadd.f32 %v33, %v59
  %v78 = vadd.f32 %v34, %v62
  %v79 = vadd.f32 %v35, %v63
  %v80 = vadd.f32 %v36, %v64
  %v81 = vadd.f32 %v37, %v65
  %v82 = vadd.f32 %v38, %v66
  %v83 = vadd.f32 %v39, %v67
  %v84 = vadd.f32 %v40, %v68
  %v85 = vtanh.pop %v77
  %v86 = vtanh.pop %v78
  %v87 = vtanh.pop %v79
  %v88 = vtanh.pop %v80
  %v89 = vtanh.pop %v81
  %v90 = vtanh.pop %v82
  %v91 = vtanh.pop %v83
  %v92 = vtanh.pop %v84
  %93 = vst [vmem:[%s2] sm:$0x1] %v85
  %94 = vst [vmem:[%s2 + $0x10] sm:$0x1] %v86
  %95 = vst [vmem:[%s2 + $0x20] sm:$0x1] %v87
  %96 = vst [vmem:[%s2 + $0x30] sm:$0x1] %v88
  %97 = vst [vmem:[%s2 + $0x40] sm:$0x1] %v89
  %98 = vst [vmem:[%s2 + $0x50] sm:$0x1] %v90
  %99 = vst [vmem:[%s2 + $0x60] sm:$0x1] %v91
  %100 = vst [vmem:[%s2 + $0x70] sm:$0x1] %v92
  %v101 = vld [vmem:[%s0 + $0x1] sm:$0x1]
  %v102 = vld [vmem:[%s0 + $0x11] sm:$0x1]
  %v103 = vld [vmem:[%s0 + $0x21] sm:$0x1]
  %v104 = vld [vmem:[%s0 + $0x31] sm:$0x1]
  %v105 = vld [vmem:[%s0 + $0x41] sm:$0x1]
  %v106 = vld [vmem:[%s0 + $0x51] sm:$0x1]
  %v107 = vld [vmem:[%s0 + $0x61] sm:$0x1]
  %v108 = vld [vmem:[%s0 + $0x71] sm:$0x1]
  %v117 = vrot.slane %v86, 7
  %vm118 = vcmask 1041409
  %v119 = vsel %vm118, %v117, %v85
  %v120 = vrot.slane %v87, 6
  %vm121 = vcmask 1042434
  %v122 = vsel %vm121, %v120, %v119
  %v123 = vrot.slane %v88, 5
  %vm124 = vcmask 1043459
  %v125 = vsel %vm124, %v123, %v122
  %v126 = vrot.slane %v89, 4
  %vm127 = vcmask 1044484
  %v128 = vsel %vm127, %v126, %v125
  %v129 = vrot.slane %v90, 3
  %vm130 = vcmask 1045509
  %v131 = vsel %vm130, %v129, %v128
  %v132 = vrot.slane %v91, 2
  %vm133 = vcmask 1046534
  %v134 = vsel %vm133, %v132, %v131
  %v135 = vrot.slane %v92, 1
  %vm136 = vcmask 1047559
  %v137 = vsel %vm136, %v135, %v134
  %139 = vmatpush.msra.mxu0 %v32
  %140 = vmatpush.msra.mxu0 %v31
  %141 = vmatpush.msra.mxu0 %v30
  %142 = vmatpush.msra.mxu0 %v29
  %143 = vmatpush.msra.mxu0 %v28
  %144 = vmatpush.msra.mxu0 %v27
  %145 = vmatpush.msra.mxu0 %v26
  %146 = vmatpush.msra.mxu0 %v25
  %147 = vmatpush.msra.mxu0 %v24
  %148 = vmatpush.msra.mxu0 %v23
  %149 = vmatpush.msra.mxu0 %v22
  %150 = vmatpush.msra.mxu0 %v21
  %151 = vmatpush.msra.mxu0 %v20
  %152 = vmatpush.msra.mxu0 %v19
  %153 = vmatpush.msra.mxu0 %v18
  %154 = vmatpush.msra.mxu0 %v17
  %155 = vmatmul.f32.gmra.mxu0 %v137
  %v156 = vpop.f32.mrf.mxu0
  %v157 = vadd.f32 0.0, %v156
  %158 = vdwg.mxu0
  %v160 = vrot.slane %v157, 1
  %v161 = vrot.slane %v157, 2
  %v162 = vrot.slane %v157, 3
  %v163 = vrot.slane %v157, 4
  %v164 = vrot.slane %v157, 5
  %v165 = vrot.slane %v157, 6
  %v166 = vrot.slane %v157, 7
  %v175 = vadd.f32 %v101, %v157
  %v176 = vadd.f32 %v102, %v160
  %v177 = vadd.f32 %v103, %v161
  %v178 = vadd.f32 %v104, %v162
  %v179 = vadd.f32 %v105, %v163
  %v180 = vadd.f32 %v106, %v164
  %v181 = vadd.f32 %v107, %v165
  %v182 = vadd.f32 %v108, %v166
  %v183 = vtanh.pop %v175
  %v184 = vtanh.pop %v176
  %v185 = vtanh.pop %v177
  %v186 = vtanh.pop %v178
  %v187 = vtanh.pop %v179
  %v188 = vtanh.pop %v180
  %v189 = vtanh.pop %v181
  %v190 = vtanh.pop %v182
  %191 = vst [vmem:[%s2 + $0x1] sm:$0x1] %v183
  %192 = vst [vmem:[%s2 + $0x11] sm:$0x1] %v184
  %193 = vst [vmem:[%s2 + $0x21] sm:$0x1] %v185
  %194 = vst [vmem:[%s2 + $0x31] sm:$0x1] %v186
  %195 = vst [vmem:[%s2 + $0x41] sm:$0x1] %v187
  %196 = vst [vmem:[%s2 + $0x51] sm:$0x1] %v188
  %197 = vst [vmem:[%s2 + $0x61] sm:$0x1] %v189
  %198 = vst [vmem:[%s2 + $0x71] sm:$0x1] %v190
  %v199 = vld [vmem:[%s0 + $0x2] sm:$0x1]
  %v200 = vld [vmem:[%s0 + $0x12] sm:$0x1]
  %v201 = vld [vmem:[%s0 + $0x22] sm:$0x1]
  %v202 = vld [vmem:[%s0 + $0x32] sm:$0x1]
  %v203 = vld [vmem:[%s0 + $0x42] sm:$0x1]
  %v204 = vld [vmem:[%s0 + $0x52] sm:$0x1]
  %v205 = vld [vmem:[%s0 + $0x62] sm:$0x1]
  %v206 = vld [vmem:[%s0 + $0x72] sm:$0x1]
  %v215 = vrot.slane %v184, 7
  %v216 = vsel %vm118, %v215, %v183
  %v217 = vrot.slane %v185, 6
  %v218 = vsel %vm121, %v217, %v216
  %v219 = vrot.slane %v186, 5
  %v220 = vsel %vm124, %v219, %v218
  %v221 = vrot.slane %v187, 4
  %v222 = vsel %vm127, %v221, %v220
  %v223 = vrot.slane %v188, 3
  %v224 = vsel %vm130, %v223, %v222
  %v225 = vrot.slane %v189, 2
  %v226 = vsel %vm133, %v225, %v224
  %v227 = vrot.slane %v190, 1
  %v228 = vsel %vm136, %v227, %v226
  %230 = vmatpush.msra.mxu0 %v32
  %231 = vmatpush.msra.mxu0 %v31
  %232 = vmatpush.msra.mxu0 %v30
  %233 = vmatpush.msra.mxu0 %v29
  %234 = vmatpush.msra.mxu0 %v28
  %235 = vmatpush.msra.mxu0 %v27
  %236 = vmatpush.msra.mxu0 %v26
  %237 = vmatpush.msra.mxu0 %v25
  %238 = vmatpush.msra.mxu0 %v24
  %239 = vmatpush.msra.mxu0 %v23
  %240 = vmatpush.msra.mxu0 %v22
  %241 = vmatpush.msra.mxu0 %v21
  %242 = vmatpush.msra.mxu0 %v20
  %243 = vmatpush.msra.mxu0 %v19
  %244 = vmatpush.msra.mxu0 %v18
  %245 = vmatpush.msra.mxu0 %v17
  %246 = vmatmul.f32.gmra.mxu0 %v228
  %v247 = vpop.f32.mrf.mxu0
  %v248 = vadd.f32 0.0, %v247
  %249 = vdwg.mxu0
  %v251 = vrot.slane %v248, 1
  %v252 = vrot.slane %v248, 2
  %v253 = vrot.slane %v248, 3
  %v254 = vrot.slane %v248, 4
  %v255 = vrot.slane %v248, 5
  %v256 = vrot.slane %v248, 6
  %v257 = vrot.slane %v248, 7
  %v266 = vadd.f32 %v199, %v248
  %v267 = vadd.f32 %v200, %v251
  %v268 = vadd.f32 %v201, %v252
  %v269 = vadd.f32 %v202, %v253
  %v270 = vadd.f32 %v203, %v254
  %v271 = vadd.f32 %v204, %v255
  %v272 = vadd.f32 %v205, %v256
  %v273 = vadd.f32 %v206, %v257
  %v274 = vtanh.pop %v266
  %v275 = vtanh.pop %v267
  %v276 = vtanh.pop %v268
  %v277 = vtanh.pop %v269
  %v278 = vtanh.pop %v270
  %v279 = vtanh.pop %v271
  %v280 = vtanh.pop %v272
  %v281 = vtanh.pop %v273
  %282 = vst [vmem:[%s2 + $0x2] sm:$0x1] %v274
  %283 = vst [vmem:[%s2 + $0x12] sm:$0x1] %v275
  %284 = vst [vmem:[%s2 + $0x22] sm:$0x1] %v276
  %285 = vst [vmem:[%s2 + $0x32] sm:$0x1] %v277
  %286 = vst [vmem:[%s2 + $0x42] sm:$0x1] %v278
  %287 = vst [vmem:[%s2 + $0x52] sm:$0x1] %v279
  %288 = vst [vmem:[%s2 + $0x62] sm:$0x1] %v280
  %289 = vst [vmem:[%s2 + $0x72] sm:$0x1] %v281
  %v290 = vld [vmem:[%s0 + $0x3] sm:$0x1]
  %v291 = vld [vmem:[%s0 + $0x13] sm:$0x1]
  %v292 = vld [vmem:[%s0 + $0x23] sm:$0x1]
  %v293 = vld [vmem:[%s0 + $0x33] sm:$0x1]
  %v294 = vld [vmem:[%s0 + $0x43] sm:$0x1]
  %v295 = vld [vmem:[%s0 + $0x53] sm:$0x1]
  %v296 = vld [vmem:[%s0 + $0x63] sm:$0x1]
  %v297 = vld [vmem:[%s0 + $0x73] sm:$0x1]
  %v306 = vrot.slane %v275, 7
  %v307 = vsel %vm118, %v306, %v274
  %v308 = vrot.slane %v276, 6
  %v309 = vsel %vm121, %v308, %v307
  %v310 = vrot.slane %v277, 5
  %v311 = vsel %vm124, %v310, %v309
  %v312 = vrot.slane %v278, 4
  %v313 = vsel %vm127, %v312, %v311
  %v314 = vrot.slane %v279, 3
  %v315 = vsel %vm130, %v314, %v313
  %v316 = vrot.slane %v280, 2
  %v317 = vsel %vm133, %v316, %v315
  %v318 = vrot.slane %v281, 1
  %v319 = vsel %vm136, %v318, %v317
  %321 = vmatpush.msra.mxu0 %v32
  %322 = vmatpush.msra.mxu0 %v31
  %323 = vmatpush.msra.mxu0 %v30
  %324 = vmatpush.msra.mxu0 %v29
  %325 = vmatpush.msra.mxu0 %v28
  %326 = vmatpush.msra.mxu0 %v27
  %327 = vmatpush.msra.mxu0 %v26
  %328 = vmatpush.msra.mxu0 %v25
  %329 = vmatpush.msra.mxu0 %v24
  %330 = vmatpush.msra.mxu0 %v23
  %331 = vmatpush.msra.mxu0 %v22
  %332 = vmatpush.msra.mxu0 %v21
  %333 = vmatpush.msra.mxu0 %v20
  %334 = vmatpush.msra.mxu0 %v19
  %335 = vmatpush.msra.mxu0 %v18
  %336 = vmatpush.msra.mxu0 %v17
  %337 = vmatmul.f32.gmra.mxu0 %v319
  %v338 = vpop.f32.mrf.mxu0
  %v339 = vadd.f32 0.0, %v338
  %340 = vdwg.mxu0
  %v342 = vrot.slane %v339, 1
  %v343 = vrot.slane %v339, 2
  %v344 = vrot.slane %v339, 3
  %v345 = vrot.slane %v339, 4
  %v346 = vrot.slane %v339, 5
  %v347 = vrot.slane %v339, 6
  %v348 = vrot.slane %v339, 7
  %v357 = vadd.f32 %v290, %v339
  %v358 = vadd.f32 %v291, %v342
  %v359 = vadd.f32 %v292, %v343
  %v360 = vadd.f32 %v293, %v344
  %v361 = vadd.f32 %v294, %v345
  %v362 = vadd.f32 %v295, %v346
  %v363 = vadd.f32 %v296, %v347
  %v364 = vadd.f32 %v297, %v348
  %v365 = vtanh.pop %v357
  %v366 = vtanh.pop %v358
  %v367 = vtanh.pop %v359
  %v368 = vtanh.pop %v360
  %v369 = vtanh.pop %v361
  %v370 = vtanh.pop %v362
  %v371 = vtanh.pop %v363
  %v372 = vtanh.pop %v364
  %373 = vst [vmem:[%s2 + $0x3] sm:$0x1] %v365
  %374 = vst [vmem:[%s2 + $0x13] sm:$0x1] %v366
  %375 = vst [vmem:[%s2 + $0x23] sm:$0x1] %v367
  %376 = vst [vmem:[%s2 + $0x33] sm:$0x1] %v368
  %377 = vst [vmem:[%s2 + $0x43] sm:$0x1] %v369
  %378 = vst [vmem:[%s2 + $0x53] sm:$0x1] %v370
  %379 = vst [vmem:[%s2 + $0x63] sm:$0x1] %v371
  %380 = vst [vmem:[%s2 + $0x73] sm:$0x1] %v372
  %v381 = vld [vmem:[%s0 + $0x4] sm:$0x1]
  %v382 = vld [vmem:[%s0 + $0x14] sm:$0x1]
  %v383 = vld [vmem:[%s0 + $0x24] sm:$0x1]
  %v384 = vld [vmem:[%s0 + $0x34] sm:$0x1]
  %v385 = vld [vmem:[%s0 + $0x44] sm:$0x1]
  %v386 = vld [vmem:[%s0 + $0x54] sm:$0x1]
  %v387 = vld [vmem:[%s0 + $0x64] sm:$0x1]
  %v388 = vld [vmem:[%s0 + $0x74] sm:$0x1]
  %v397 = vrot.slane %v366, 7
  %v398 = vsel %vm118, %v397, %v365
  %v399 = vrot.slane %v367, 6
  %v400 = vsel %vm121, %v399, %v398
  %v401 = vrot.slane %v368, 5
  %v402 = vsel %vm124, %v401, %v400
  %v403 = vrot.slane %v369, 4
  %v404 = vsel %vm127, %v403, %v402
  %v405 = vrot.slane %v370, 3
  %v406 = vsel %vm130, %v405, %v404
  %v407 = vrot.slane %v371, 2
  %v408 = vsel %vm133, %v407, %v406
  %v409 = vrot.slane %v372, 1
  %v410 = vsel %vm136, %v409, %v408
  %412 = vmatpush.msra.mxu0 %v32
  %413 = vmatpush.msra.mxu0 %v31
  %414 = vmatpush.msra.mxu0 %v30
  %415 = vmatpush.msra.mxu0 %v29
  %416 = vmatpush.msra.mxu0 %v28
  %417 = vmatpush.msra.mxu0 %v27
  %418 = vmatpush.msra.mxu0 %v26
  %419 = vmatpush.msra.mxu0 %v25
  %420 = vmatpush.msra.mxu0 %v24
  %421 = vmatpush.msra.mxu0 %v23
  %422 = vmatpush.msra.mxu0 %v22
  %423 = vmatpush.msra.mxu0 %v21
  %424 = vmatpush.msra.mxu0 %v20
  %425 = vmatpush.msra.mxu0 %v19
  %426 = vmatpush.msra.mxu0 %v18
  %427 = vmatpush.msra.mxu0 %v17
  %428 = vmatmul.f32.gmra.mxu0 %v410
  %v429 = vpop.f32.mrf.mxu0
  %v430 = vadd.f32 0.0, %v429
  %431 = vdwg.mxu0
  %v433 = vrot.slane %v430, 1
  %v434 = vrot.slane %v430, 2
  %v435 = vrot.slane %v430, 3
  %v436 = vrot.slane %v430, 4
  %v437 = vrot.slane %v430, 5
  %v438 = vrot.slane %v430, 6
  %v439 = vrot.slane %v430, 7
  %v448 = vadd.f32 %v381, %v430
  %v449 = vadd.f32 %v382, %v433
  %v450 = vadd.f32 %v383, %v434
  %v451 = vadd.f32 %v384, %v435
  %v452 = vadd.f32 %v385, %v436
  %v453 = vadd.f32 %v386, %v437
  %v454 = vadd.f32 %v387, %v438
  %v455 = vadd.f32 %v388, %v439
  %v456 = vtanh.pop %v448
  %v457 = vtanh.pop %v449
  %v458 = vtanh.pop %v450
  %v459 = vtanh.pop %v451
  %v460 = vtanh.pop %v452
  %v461 = vtanh.pop %v453
  %v462 = vtanh.pop %v454
  %v463 = vtanh.pop %v455
  %464 = vst [vmem:[%s2 + $0x4] sm:$0x1] %v456
  %465 = vst [vmem:[%s2 + $0x14] sm:$0x1] %v457
  %466 = vst [vmem:[%s2 + $0x24] sm:$0x1] %v458
  %467 = vst [vmem:[%s2 + $0x34] sm:$0x1] %v459
  %468 = vst [vmem:[%s2 + $0x44] sm:$0x1] %v460
  %469 = vst [vmem:[%s2 + $0x54] sm:$0x1] %v461
  %470 = vst [vmem:[%s2 + $0x64] sm:$0x1] %v462
  %471 = vst [vmem:[%s2 + $0x74] sm:$0x1] %v463
  %v472 = vld [vmem:[%s0 + $0x5] sm:$0x1]
  %v473 = vld [vmem:[%s0 + $0x15] sm:$0x1]
  %v474 = vld [vmem:[%s0 + $0x25] sm:$0x1]
  %v475 = vld [vmem:[%s0 + $0x35] sm:$0x1]
  %v476 = vld [vmem:[%s0 + $0x45] sm:$0x1]
  %v477 = vld [vmem:[%s0 + $0x55] sm:$0x1]
  %v478 = vld [vmem:[%s0 + $0x65] sm:$0x1]
  %v479 = vld [vmem:[%s0 + $0x75] sm:$0x1]
  %v488 = vrot.slane %v457, 7
  %v489 = vsel %vm118, %v488, %v456
  %v490 = vrot.slane %v458, 6
  %v491 = vsel %vm121, %v490, %v489
  %v492 = vrot.slane %v459, 5
  %v493 = vsel %vm124, %v492, %v491
  %v494 = vrot.slane %v460, 4
  %v495 = vsel %vm127, %v494, %v493
  %v496 = vrot.slane %v461, 3
  %v497 = vsel %vm130, %v496, %v495
  %v498 = vrot.slane %v462, 2
  %v499 = vsel %vm133, %v498, %v497
  %v500 = vrot.slane %v463, 1
  %v501 = vsel %vm136, %v500, %v499
  %503 = vmatpush.msra.mxu0 %v32
  %504 = vmatpush.msra.mxu0 %v31
  %505 = vmatpush.msra.mxu0 %v30
  %506 = vmatpush.msra.mxu0 %v29
  %507 = vmatpush.msra.mxu0 %v28
  %508 = vmatpush.msra.mxu0 %v27
  %509 = vmatpush.msra.mxu0 %v26
  %510 = vmatpush.msra.mxu0 %v25
  %511 = vmatpush.msra.mxu0 %v24
  %512 = vmatpush.msra.mxu0 %v23
  %513 = vmatpush.msra.mxu0 %v22
  %514 = vmatpush.msra.mxu0 %v21
  %515 = vmatpush.msra.mxu0 %v20
  %516 = vmatpush.msra.mxu0 %v19
  %517 = vmatpush.msra.mxu0 %v18
  %518 = vmatpush.msra.mxu0 %v17
  %519 = vmatmul.f32.gmra.mxu0 %v501
  %v520 = vpop.f32.mrf.mxu0
  %v521 = vadd.f32 0.0, %v520
  %522 = vdwg.mxu0
  %v524 = vrot.slane %v521, 1
  %v525 = vrot.slane %v521, 2
  %v526 = vrot.slane %v521, 3
  %v527 = vrot.slane %v521, 4
  %v528 = vrot.slane %v521, 5
  %v529 = vrot.slane %v521, 6
  %v530 = vrot.slane %v521, 7
  %v539 = vadd.f32 %v472, %v521
  %v540 = vadd.f32 %v473, %v524
  %v541 = vadd.f32 %v474, %v525
  %v542 = vadd.f32 %v475, %v526
  %v543 = vadd.f32 %v476, %v527
  %v544 = vadd.f32 %v477, %v528
  %v545 = vadd.f32 %v478, %v529
  %v546 = vadd.f32 %v479, %v530
  %v547 = vtanh.pop %v539
  %v548 = vtanh.pop %v540
  %v549 = vtanh.pop %v541
  %v550 = vtanh.pop %v542
  %v551 = vtanh.pop %v543
  %v552 = vtanh.pop %v544
  %v553 = vtanh.pop %v545
  %v554 = vtanh.pop %v546
  %555 = vst [vmem:[%s2 + $0x5] sm:$0x1] %v547
  %556 = vst [vmem:[%s2 + $0x15] sm:$0x1] %v548
  %557 = vst [vmem:[%s2 + $0x25] sm:$0x1] %v549
  %558 = vst [vmem:[%s2 + $0x35] sm:$0x1] %v550
  %559 = vst [vmem:[%s2 + $0x45] sm:$0x1] %v551
  %560 = vst [vmem:[%s2 + $0x55] sm:$0x1] %v552
  %561 = vst [vmem:[%s2 + $0x65] sm:$0x1] %v553
  %562 = vst [vmem:[%s2 + $0x75] sm:$0x1] %v554
  %v563 = vld [vmem:[%s0 + $0x6] sm:$0x1]
  %v564 = vld [vmem:[%s0 + $0x16] sm:$0x1]
  %v565 = vld [vmem:[%s0 + $0x26] sm:$0x1]
  %v566 = vld [vmem:[%s0 + $0x36] sm:$0x1]
  %v567 = vld [vmem:[%s0 + $0x46] sm:$0x1]
  %v568 = vld [vmem:[%s0 + $0x56] sm:$0x1]
  %v569 = vld [vmem:[%s0 + $0x66] sm:$0x1]
  %v570 = vld [vmem:[%s0 + $0x76] sm:$0x1]
  %v579 = vrot.slane %v548, 7
  %v580 = vsel %vm118, %v579, %v547
  %v581 = vrot.slane %v549, 6
  %v582 = vsel %vm121, %v581, %v580
  %v583 = vrot.slane %v550, 5
  %v584 = vsel %vm124, %v583, %v582
  %v585 = vrot.slane %v551, 4
  %v586 = vsel %vm127, %v585, %v584
  %v587 = vrot.slane %v552, 3
  %v588 = vsel %vm130, %v587, %v586
  %v589 = vrot.slane %v553, 2
  %v590 = vsel %vm133, %v589, %v588
  %v591 = vrot.slane %v554, 1
  %v592 = vsel %vm136, %v591, %v590
  %594 = vmatpush.msra.mxu0 %v32
  %595 = vmatpush.msra.mxu0 %v31
  %596 = vmatpush.msra.mxu0 %v30
  %597 = vmatpush.msra.mxu0 %v29
  %598 = vmatpush.msra.mxu0 %v28
  %599 = vmatpush.msra.mxu0 %v27
  %600 = vmatpush.msra.mxu0 %v26
  %601 = vmatpush.msra.mxu0 %v25
  %602 = vmatpush.msra.mxu0 %v24
  %603 = vmatpush.msra.mxu0 %v23
  %604 = vmatpush.msra.mxu0 %v22
  %605 = vmatpush.msra.mxu0 %v21
  %606 = vmatpush.msra.mxu0 %v20
  %607 = vmatpush.msra.mxu0 %v19
  %608 = vmatpush.msra.mxu0 %v18
  %609 = vmatpush.msra.mxu0 %v17
  %610 = vmatmul.f32.gmra.mxu0 %v592
  %v611 = vpop.f32.mrf.mxu0
  %v612 = vadd.f32 0.0, %v611
  %613 = vdwg.mxu0
  %v615 = vrot.slane %v612, 1
  %v616 = vrot.slane %v612, 2
  %v617 = vrot.slane %v612, 3
  %v618 = vrot.slane %v612, 4
  %v619 = vrot.slane %v612, 5
  %v620 = vrot.slane %v612, 6
  %v621 = vrot.slane %v612, 7
  %v630 = vadd.f32 %v563, %v612
  %v631 = vadd.f32 %v564, %v615
  %v632 = vadd.f32 %v565, %v616
  %v633 = vadd.f32 %v566, %v617
  %v634 = vadd.f32 %v567, %v618
  %v635 = vadd.f32 %v568, %v619
  %v636 = vadd.f32 %v569, %v620
  %v637 = vadd.f32 %v570, %v621
  %v638 = vtanh.pop %v630
  %v639 = vtanh.pop %v631
  %v640 = vtanh.pop %v632
  %v641 = vtanh.pop %v633
  %v642 = vtanh.pop %v634
  %v643 = vtanh.pop %v635
  %v644 = vtanh.pop %v636
  %v645 = vtanh.pop %v637
  %646 = vst [vmem:[%s2 + $0x6] sm:$0x1] %v638
  %647 = vst [vmem:[%s2 + $0x16] sm:$0x1] %v639
  %648 = vst [vmem:[%s2 + $0x26] sm:$0x1] %v640
  %649 = vst [vmem:[%s2 + $0x36] sm:$0x1] %v641
  %650 = vst [vmem:[%s2 + $0x46] sm:$0x1] %v642
  %651 = vst [vmem:[%s2 + $0x56] sm:$0x1] %v643
  %652 = vst [vmem:[%s2 + $0x66] sm:$0x1] %v644
  %653 = vst [vmem:[%s2 + $0x76] sm:$0x1] %v645
  %v654 = vld [vmem:[%s0 + $0x7] sm:$0x1]
  %v655 = vld [vmem:[%s0 + $0x17] sm:$0x1]
  %v656 = vld [vmem:[%s0 + $0x27] sm:$0x1]
  %v657 = vld [vmem:[%s0 + $0x37] sm:$0x1]
  %v658 = vld [vmem:[%s0 + $0x47] sm:$0x1]
  %v659 = vld [vmem:[%s0 + $0x57] sm:$0x1]
  %v660 = vld [vmem:[%s0 + $0x67] sm:$0x1]
  %v661 = vld [vmem:[%s0 + $0x77] sm:$0x1]
  %v670 = vrot.slane %v639, 7
  %v671 = vsel %vm118, %v670, %v638
  %v672 = vrot.slane %v640, 6
  %v673 = vsel %vm121, %v672, %v671
  %v674 = vrot.slane %v641, 5
  %v675 = vsel %vm124, %v674, %v673
  %v676 = vrot.slane %v642, 4
  %v677 = vsel %vm127, %v676, %v675
  %v678 = vrot.slane %v643, 3
  %v679 = vsel %vm130, %v678, %v677
  %v680 = vrot.slane %v644, 2
  %v681 = vsel %vm133, %v680, %v679
  %v682 = vrot.slane %v645, 1
  %v683 = vsel %vm136, %v682, %v681
  %685 = vmatpush.msra.mxu0 %v32
  %686 = vmatpush.msra.mxu0 %v31
  %687 = vmatpush.msra.mxu0 %v30
  %688 = vmatpush.msra.mxu0 %v29
  %689 = vmatpush.msra.mxu0 %v28
  %690 = vmatpush.msra.mxu0 %v27
  %691 = vmatpush.msra.mxu0 %v26
  %692 = vmatpush.msra.mxu0 %v25
  %693 = vmatpush.msra.mxu0 %v24
  %694 = vmatpush.msra.mxu0 %v23
  %695 = vmatpush.msra.mxu0 %v22
  %696 = vmatpush.msra.mxu0 %v21
  %697 = vmatpush.msra.mxu0 %v20
  %698 = vmatpush.msra.mxu0 %v19
  %699 = vmatpush.msra.mxu0 %v18
  %700 = vmatpush.msra.mxu0 %v17
  %701 = vmatmul.f32.gmra.mxu0 %v683
  %v702 = vpop.f32.mrf.mxu0
  %v703 = vadd.f32 0.0, %v702
  %704 = vdwg.mxu0
  %v706 = vrot.slane %v703, 1
  %v707 = vrot.slane %v703, 2
  %v708 = vrot.slane %v703, 3
  %v709 = vrot.slane %v703, 4
  %v710 = vrot.slane %v703, 5
  %v711 = vrot.slane %v703, 6
  %v712 = vrot.slane %v703, 7
  %v721 = vadd.f32 %v654, %v703
  %v722 = vadd.f32 %v655, %v706
  %v723 = vadd.f32 %v656, %v707
  %v724 = vadd.f32 %v657, %v708
  %v725 = vadd.f32 %v658, %v709
  %v726 = vadd.f32 %v659, %v710
  %v727 = vadd.f32 %v660, %v711
  %v728 = vadd.f32 %v661, %v712
  %v729 = vtanh.pop %v721
  %v730 = vtanh.pop %v722
  %v731 = vtanh.pop %v723
  %v732 = vtanh.pop %v724
  %v733 = vtanh.pop %v725
  %v734 = vtanh.pop %v726
  %v735 = vtanh.pop %v727
  %v736 = vtanh.pop %v728
  %737 = vst [vmem:[%s2 + $0x7] sm:$0x1] %v729
  %738 = vst [vmem:[%s2 + $0x17] sm:$0x1] %v730
  %739 = vst [vmem:[%s2 + $0x27] sm:$0x1] %v731
  %740 = vst [vmem:[%s2 + $0x37] sm:$0x1] %v732
  %741 = vst [vmem:[%s2 + $0x47] sm:$0x1] %v733
  %742 = vst [vmem:[%s2 + $0x57] sm:$0x1] %v734
  %743 = vst [vmem:[%s2 + $0x67] sm:$0x1] %v735
  %744 = vst [vmem:[%s2 + $0x77] sm:$0x1] %v736
  %v745 = vld [vmem:[%s0 + $0x8] sm:$0x1]
  %v746 = vld [vmem:[%s0 + $0x18] sm:$0x1]
  %v747 = vld [vmem:[%s0 + $0x28] sm:$0x1]
  %v748 = vld [vmem:[%s0 + $0x38] sm:$0x1]
  %v749 = vld [vmem:[%s0 + $0x48] sm:$0x1]
  %v750 = vld [vmem:[%s0 + $0x58] sm:$0x1]
  %v751 = vld [vmem:[%s0 + $0x68] sm:$0x1]
  %v752 = vld [vmem:[%s0 + $0x78] sm:$0x1]
  %v761 = vrot.slane %v730, 7
  %v762 = vsel %vm118, %v761, %v729
  %v763 = vrot.slane %v731, 6
  %v764 = vsel %vm121, %v763, %v762
  %v765 = vrot.slane %v732, 5
  %v766 = vsel %vm124, %v765, %v764
  %v767 = vrot.slane %v733, 4
  %v768 = vsel %vm127, %v767, %v766
  %v769 = vrot.slane %v734, 3
  %v770 = vsel %vm130, %v769, %v768
  %v771 = vrot.slane %v735, 2
  %v772 = vsel %vm133, %v771, %v770
  %v773 = vrot.slane %v736, 1
  %v774 = vsel %vm136, %v773, %v772
  %776 = vmatpush.msra.mxu0 %v32
  %777 = vmatpush.msra.mxu0 %v31
  %778 = vmatpush.msra.mxu0 %v30
  %779 = vmatpush.msra.mxu0 %v29
  %780 = vmatpush.msra.mxu0 %v28
  %781 = vmatpush.msra.mxu0 %v27
  %782 = vmatpush.msra.mxu0 %v26
  %783 = vmatpush.msra.mxu0 %v25
  %784 = vmatpush.msra.mxu0 %v24
  %785 = vmatpush.msra.mxu0 %v23
  %786 = vmatpush.msra.mxu0 %v22
  %787 = vmatpush.msra.mxu0 %v21
  %788 = vmatpush.msra.mxu0 %v20
  %789 = vmatpush.msra.mxu0 %v19
  %790 = vmatpush.msra.mxu0 %v18
  %791 = vmatpush.msra.mxu0 %v17
  %792 = vmatmul.f32.gmra.mxu0 %v774
  %v793 = vpop.f32.mrf.mxu0
  %v794 = vadd.f32 0.0, %v793
  %795 = vdwg.mxu0
  %v797 = vrot.slane %v794, 1
  %v798 = vrot.slane %v794, 2
  %v799 = vrot.slane %v794, 3
  %v800 = vrot.slane %v794, 4
  %v801 = vrot.slane %v794, 5
  %v802 = vrot.slane %v794, 6
  %v803 = vrot.slane %v794, 7
  %v812 = vadd.f32 %v745, %v794
  %v813 = vadd.f32 %v746, %v797
  %v814 = vadd.f32 %v747, %v798
  %v815 = vadd.f32 %v748, %v799
  %v816 = vadd.f32 %v749, %v800
  %v817 = vadd.f32 %v750, %v801
  %v818 = vadd.f32 %v751, %v802
  %v819 = vadd.f32 %v752, %v803
  %v820 = vtanh.pop %v812
  %v821 = vtanh.pop %v813
  %v822 = vtanh.pop %v814
  %v823 = vtanh.pop %v815
  %v824 = vtanh.pop %v816
  %v825 = vtanh.pop %v817
  %v826 = vtanh.pop %v818
  %v827 = vtanh.pop %v819
  %828 = vst [vmem:[%s2 + $0x8] sm:$0x1] %v820
  %829 = vst [vmem:[%s2 + $0x18] sm:$0x1] %v821
  %830 = vst [vmem:[%s2 + $0x28] sm:$0x1] %v822
  %831 = vst [vmem:[%s2 + $0x38] sm:$0x1] %v823
  %832 = vst [vmem:[%s2 + $0x48] sm:$0x1] %v824
  %833 = vst [vmem:[%s2 + $0x58] sm:$0x1] %v825
  %834 = vst [vmem:[%s2 + $0x68] sm:$0x1] %v826
  %835 = vst [vmem:[%s2 + $0x78] sm:$0x1] %v827
  %v836 = vld [vmem:[%s0 + $0x9] sm:$0x1]
  %v837 = vld [vmem:[%s0 + $0x19] sm:$0x1]
  %v838 = vld [vmem:[%s0 + $0x29] sm:$0x1]
  %v839 = vld [vmem:[%s0 + $0x39] sm:$0x1]
  %v840 = vld [vmem:[%s0 + $0x49] sm:$0x1]
  %v841 = vld [vmem:[%s0 + $0x59] sm:$0x1]
  %v842 = vld [vmem:[%s0 + $0x69] sm:$0x1]
  %v843 = vld [vmem:[%s0 + $0x79] sm:$0x1]
  %v852 = vrot.slane %v821, 7
  %v853 = vsel %vm118, %v852, %v820
  %v854 = vrot.slane %v822, 6
  %v855 = vsel %vm121, %v854, %v853
  %v856 = vrot.slane %v823, 5
  %v857 = vsel %vm124, %v856, %v855
  %v858 = vrot.slane %v824, 4
  %v859 = vsel %vm127, %v858, %v857
  %v860 = vrot.slane %v825, 3
  %v861 = vsel %vm130, %v860, %v859
  %v862 = vrot.slane %v826, 2
  %v863 = vsel %vm133, %v862, %v861
  %v864 = vrot.slane %v827, 1
  %v865 = vsel %vm136, %v864, %v863
  %867 = vmatpush.msra.mxu0 %v32
  %868 = vmatpush.msra.mxu0 %v31
  %869 = vmatpush.msra.mxu0 %v30
  %870 = vmatpush.msra.mxu0 %v29
  %871 = vmatpush.msra.mxu0 %v28
  %872 = vmatpush.msra.mxu0 %v27
  %873 = vmatpush.msra.mxu0 %v26
  %874 = vmatpush.msra.mxu0 %v25
  %875 = vmatpush.msra.mxu0 %v24
  %876 = vmatpush.msra.mxu0 %v23
  %877 = vmatpush.msra.mxu0 %v22
  %878 = vmatpush.msra.mxu0 %v21
  %879 = vmatpush.msra.mxu0 %v20
  %880 = vmatpush.msra.mxu0 %v19
  %881 = vmatpush.msra.mxu0 %v18
  %882 = vmatpush.msra.mxu0 %v17
  %883 = vmatmul.f32.gmra.mxu0 %v865
  %v884 = vpop.f32.mrf.mxu0
  %v885 = vadd.f32 0.0, %v884
  %886 = vdwg.mxu0
  %v888 = vrot.slane %v885, 1
  %v889 = vrot.slane %v885, 2
  %v890 = vrot.slane %v885, 3
  %v891 = vrot.slane %v885, 4
  %v892 = vrot.slane %v885, 5
  %v893 = vrot.slane %v885, 6
  %v894 = vrot.slane %v885, 7
  %v903 = vadd.f32 %v836, %v885
  %v904 = vadd.f32 %v837, %v888
  %v905 = vadd.f32 %v838, %v889
  %v906 = vadd.f32 %v839, %v890
  %v907 = vadd.f32 %v840, %v891
  %v908 = vadd.f32 %v841, %v892
  %v909 = vadd.f32 %v842, %v893
  %v910 = vadd.f32 %v843, %v894
  %v911 = vtanh.pop %v903
  %v912 = vtanh.pop %v904
  %v913 = vtanh.pop %v905
  %v914 = vtanh.pop %v906
  %v915 = vtanh.pop %v907
  %v916 = vtanh.pop %v908
  %v917 = vtanh.pop %v909
  %v918 = vtanh.pop %v910
  %919 = vst [vmem:[%s2 + $0x9] sm:$0x1] %v911
  %920 = vst [vmem:[%s2 + $0x19] sm:$0x1] %v912
  %921 = vst [vmem:[%s2 + $0x29] sm:$0x1] %v913
  %922 = vst [vmem:[%s2 + $0x39] sm:$0x1] %v914
  %923 = vst [vmem:[%s2 + $0x49] sm:$0x1] %v915
  %924 = vst [vmem:[%s2 + $0x59] sm:$0x1] %v916
  %925 = vst [vmem:[%s2 + $0x69] sm:$0x1] %v917
  %926 = vst [vmem:[%s2 + $0x79] sm:$0x1] %v918
  %v927 = vld [vmem:[%s0 + $0xa] sm:$0x1]
  %v928 = vld [vmem:[%s0 + $0x1a] sm:$0x1]
  %v929 = vld [vmem:[%s0 + $0x2a] sm:$0x1]
  %v930 = vld [vmem:[%s0 + $0x3a] sm:$0x1]
  %v931 = vld [vmem:[%s0 + $0x4a] sm:$0x1]
  %v932 = vld [vmem:[%s0 + $0x5a] sm:$0x1]
  %v933 = vld [vmem:[%s0 + $0x6a] sm:$0x1]
  %v934 = vld [vmem:[%s0 + $0x7a] sm:$0x1]
  %v943 = vrot.slane %v912, 7
  %v944 = vsel %vm118, %v943, %v911
  %v945 = vrot.slane %v913, 6
  %v946 = vsel %vm121, %v945, %v944
  %v947 = vrot.slane %v914, 5
  %v948 = vsel %vm124, %v947, %v946
  %v949 = vrot.slane %v915, 4
  %v950 = vsel %vm127, %v949, %v948
  %v951 = vrot.slane %v916, 3
  %v952 = vsel %vm130, %v951, %v950
  %v953 = vrot.slane %v917, 2
  %v954 = vsel %vm133, %v953, %v952
  %v955 = vrot.slane %v918, 1
  %v956 = vsel %vm136, %v955, %v954
  %958 = vmatpush.msra.mxu0 %v32
  %959 = vmatpush.msra.mxu0 %v31
  %960 = vmatpush.msra.mxu0 %v30
  %961 = vmatpush.msra.mxu0 %v29
  %962 = vmatpush.msra.mxu0 %v28
  %963 = vmatpush.msra.mxu0 %v27
  %964 = vmatpush.msra.mxu0 %v26
  %965 = vmatpush.msra.mxu0 %v25
  %966 = vmatpush.msra.mxu0 %v24
  %967 = vmatpush.msra.mxu0 %v23
  %968 = vmatpush.msra.mxu0 %v22
  %969 = vmatpush.msra.mxu0 %v21
  %970 = vmatpush.msra.mxu0 %v20
  %971 = vmatpush.msra.mxu0 %v19
  %972 = vmatpush.msra.mxu0 %v18
  %973 = vmatpush.msra.mxu0 %v17
  %974 = vmatmul.f32.gmra.mxu0 %v956
  %v975 = vpop.f32.mrf.mxu0
  %v976 = vadd.f32 0.0, %v975
  %977 = vdwg.mxu0
  %v979 = vrot.slane %v976, 1
  %v980 = vrot.slane %v976, 2
  %v981 = vrot.slane %v976, 3
  %v982 = vrot.slane %v976, 4
  %v983 = vrot.slane %v976, 5
  %v984 = vrot.slane %v976, 6
  %v985 = vrot.slane %v976, 7
  %v994 = vadd.f32 %v927, %v976
  %v995 = vadd.f32 %v928, %v979
  %v996 = vadd.f32 %v929, %v980
  %v997 = vadd.f32 %v930, %v981
  %v998 = vadd.f32 %v931, %v982
  %v999 = vadd.f32 %v932, %v983
  %v1000 = vadd.f32 %v933, %v984
  %v1001 = vadd.f32 %v934, %v985
  %v1002 = vtanh.pop %v994
  %v1003 = vtanh.pop %v995
  %v1004 = vtanh.pop %v996
  %v1005 = vtanh.pop %v997
  %v1006 = vtanh.pop %v998
  %v1007 = vtanh.pop %v999
  %v1008 = vtanh.pop %v1000
  %v1009 = vtanh.pop %v1001
  %1010 = vst [vmem:[%s2 + $0xa] sm:$0x1] %v1002
  %1011 = vst [vmem:[%s2 + $0x1a] sm:$0x1] %v1003
  %1012 = vst [vmem:[%s2 + $0x2a] sm:$0x1] %v1004
  %1013 = vst [vmem:[%s2 + $0x3a] sm:$0x1] %v1005
  %1014 = vst [vmem:[%s2 + $0x4a] sm:$0x1] %v1006
  %1015 = vst [vmem:[%s2 + $0x5a] sm:$0x1] %v1007
  %1016 = vst [vmem:[%s2 + $0x6a] sm:$0x1] %v1008
  %1017 = vst [vmem:[%s2 + $0x7a] sm:$0x1] %v1009
  %v1018 = vld [vmem:[%s0 + $0xb] sm:$0x1]
  %v1019 = vld [vmem:[%s0 + $0x1b] sm:$0x1]
  %v1020 = vld [vmem:[%s0 + $0x2b] sm:$0x1]
  %v1021 = vld [vmem:[%s0 + $0x3b] sm:$0x1]
  %v1022 = vld [vmem:[%s0 + $0x4b] sm:$0x1]
  %v1023 = vld [vmem:[%s0 + $0x5b] sm:$0x1]
  %v1024 = vld [vmem:[%s0 + $0x6b] sm:$0x1]
  %v1025 = vld [vmem:[%s0 + $0x7b] sm:$0x1]
  %v1034 = vrot.slane %v1003, 7
  %v1035 = vsel %vm118, %v1034, %v1002
  %v1036 = vrot.slane %v1004, 6
  %v1037 = vsel %vm121, %v1036, %v1035
  %v1038 = vrot.slane %v1005, 5
  %v1039 = vsel %vm124, %v1038, %v1037
  %v1040 = vrot.slane %v1006, 4
  %v1041 = vsel %vm127, %v1040, %v1039
  %v1042 = vrot.slane %v1007, 3
  %v1043 = vsel %vm130, %v1042, %v1041
  %v1044 = vrot.slane %v1008, 2
  %v1045 = vsel %vm133, %v1044, %v1043
  %v1046 = vrot.slane %v1009, 1
  %v1047 = vsel %vm136, %v1046, %v1045
  %1049 = vmatpush.msra.mxu0 %v32
  %1050 = vmatpush.msra.mxu0 %v31
  %1051 = vmatpush.msra.mxu0 %v30
  %1052 = vmatpush.msra.mxu0 %v29
  %1053 = vmatpush.msra.mxu0 %v28
  %1054 = vmatpush.msra.mxu0 %v27
  %1055 = vmatpush.msra.mxu0 %v26
  %1056 = vmatpush.msra.mxu0 %v25
  %1057 = vmatpush.msra.mxu0 %v24
  %1058 = vmatpush.msra.mxu0 %v23
  %1059 = vmatpush.msra.mxu0 %v22
  %1060 = vmatpush.msra.mxu0 %v21
  %1061 = vmatpush.msra.mxu0 %v20
  %1062 = vmatpush.msra.mxu0 %v19
  %1063 = vmatpush.msra.mxu0 %v18
  %1064 = vmatpush.msra.mxu0 %v17
  %1065 = vmatmul.f32.gmra.mxu0 %v1047
  %v1066 = vpop.f32.mrf.mxu0
  %v1067 = vadd.f32 0.0, %v1066
  %1068 = vdwg.mxu0
  %v1070 = vrot.slane %v1067, 1
  %v1071 = vrot.slane %v1067, 2
  %v1072 = vrot.slane %v1067, 3
  %v1073 = vrot.slane %v1067, 4
  %v1074 = vrot.slane %v1067, 5
  %v1075 = vrot.slane %v1067, 6
  %v1076 = vrot.slane %v1067, 7
  %v1085 = vadd.f32 %v1018, %v1067
  %v1086 = vadd.f32 %v1019, %v1070
  %v1087 = vadd.f32 %v1020, %v1071
  %v1088 = vadd.f32 %v1021, %v1072
  %v1089 = vadd.f32 %v1022, %v1073
  %v1090 = vadd.f32 %v1023, %v1074
  %v1091 = vadd.f32 %v1024, %v1075
  %v1092 = vadd.f32 %v1025, %v1076
  %v1093 = vtanh.pop %v1085
  %v1094 = vtanh.pop %v1086
  %v1095 = vtanh.pop %v1087
  %v1096 = vtanh.pop %v1088
  %v1097 = vtanh.pop %v1089
  %v1098 = vtanh.pop %v1090
  %v1099 = vtanh.pop %v1091
  %v1100 = vtanh.pop %v1092
  %1101 = vst [vmem:[%s2 + $0xb] sm:$0x1] %v1093
  %1102 = vst [vmem:[%s2 + $0x1b] sm:$0x1] %v1094
  %1103 = vst [vmem:[%s2 + $0x2b] sm:$0x1] %v1095
  %1104 = vst [vmem:[%s2 + $0x3b] sm:$0x1] %v1096
  %1105 = vst [vmem:[%s2 + $0x4b] sm:$0x1] %v1097
  %1106 = vst [vmem:[%s2 + $0x5b] sm:$0x1] %v1098
  %1107 = vst [vmem:[%s2 + $0x6b] sm:$0x1] %v1099
  %1108 = vst [vmem:[%s2 + $0x7b] sm:$0x1] %v1100
  %v1109 = vld [vmem:[%s0 + $0xc] sm:$0x1]
  %v1110 = vld [vmem:[%s0 + $0x1c] sm:$0x1]
  %v1111 = vld [vmem:[%s0 + $0x2c] sm:$0x1]
  %v1112 = vld [vmem:[%s0 + $0x3c] sm:$0x1]
  %v1113 = vld [vmem:[%s0 + $0x4c] sm:$0x1]
  %v1114 = vld [vmem:[%s0 + $0x5c] sm:$0x1]
  %v1115 = vld [vmem:[%s0 + $0x6c] sm:$0x1]
  %v1116 = vld [vmem:[%s0 + $0x7c] sm:$0x1]
  %v1125 = vrot.slane %v1094, 7
  %v1126 = vsel %vm118, %v1125, %v1093
  %v1127 = vrot.slane %v1095, 6
  %v1128 = vsel %vm121, %v1127, %v1126
  %v1129 = vrot.slane %v1096, 5
  %v1130 = vsel %vm124, %v1129, %v1128
  %v1131 = vrot.slane %v1097, 4
  %v1132 = vsel %vm127, %v1131, %v1130
  %v1133 = vrot.slane %v1098, 3
  %v1134 = vsel %vm130, %v1133, %v1132
  %v1135 = vrot.slane %v1099, 2
  %v1136 = vsel %vm133, %v1135, %v1134
  %v1137 = vrot.slane %v1100, 1
  %v1138 = vsel %vm136, %v1137, %v1136
  %1140 = vmatpush.msra.mxu0 %v32
  %1141 = vmatpush.msra.mxu0 %v31
  %1142 = vmatpush.msra.mxu0 %v30
  %1143 = vmatpush.msra.mxu0 %v29
  %1144 = vmatpush.msra.mxu0 %v28
  %1145 = vmatpush.msra.mxu0 %v27
  %1146 = vmatpush.msra.mxu0 %v26
  %1147 = vmatpush.msra.mxu0 %v25
  %1148 = vmatpush.msra.mxu0 %v24
  %1149 = vmatpush.msra.mxu0 %v23
  %1150 = vmatpush.msra.mxu0 %v22
  %1151 = vmatpush.msra.mxu0 %v21
  %1152 = vmatpush.msra.mxu0 %v20
  %1153 = vmatpush.msra.mxu0 %v19
  %1154 = vmatpush.msra.mxu0 %v18
  %1155 = vmatpush.msra.mxu0 %v17
  %1156 = vmatmul.f32.gmra.mxu0 %v1138
  %v1157 = vpop.f32.mrf.mxu0
  %v1158 = vadd.f32 0.0, %v1157
  %1159 = vdwg.mxu0
  %v1161 = vrot.slane %v1158, 1
  %v1162 = vrot.slane %v1158, 2
  %v1163 = vrot.slane %v1158, 3
  %v1164 = vrot.slane %v1158, 4
  %v1165 = vrot.slane %v1158, 5
  %v1166 = vrot.slane %v1158, 6
  %v1167 = vrot.slane %v1158, 7
  %v1176 = vadd.f32 %v1109, %v1158
  %v1177 = vadd.f32 %v1110, %v1161
  %v1178 = vadd.f32 %v1111, %v1162
  %v1179 = vadd.f32 %v1112, %v1163
  %v1180 = vadd.f32 %v1113, %v1164
  %v1181 = vadd.f32 %v1114, %v1165
  %v1182 = vadd.f32 %v1115, %v1166
  %v1183 = vadd.f32 %v1116, %v1167
  %v1184 = vtanh.pop %v1176
  %v1185 = vtanh.pop %v1177
  %v1186 = vtanh.pop %v1178
  %v1187 = vtanh.pop %v1179
  %v1188 = vtanh.pop %v1180
  %v1189 = vtanh.pop %v1181
  %v1190 = vtanh.pop %v1182
  %v1191 = vtanh.pop %v1183
  %1192 = vst [vmem:[%s2 + $0xc] sm:$0x1] %v1184
  %1193 = vst [vmem:[%s2 + $0x1c] sm:$0x1] %v1185
  %1194 = vst [vmem:[%s2 + $0x2c] sm:$0x1] %v1186
  %1195 = vst [vmem:[%s2 + $0x3c] sm:$0x1] %v1187
  %1196 = vst [vmem:[%s2 + $0x4c] sm:$0x1] %v1188
  %1197 = vst [vmem:[%s2 + $0x5c] sm:$0x1] %v1189
  %1198 = vst [vmem:[%s2 + $0x6c] sm:$0x1] %v1190
  %1199 = vst [vmem:[%s2 + $0x7c] sm:$0x1] %v1191
  %v1200 = vld [vmem:[%s0 + $0xd] sm:$0x1]
  %v1201 = vld [vmem:[%s0 + $0x1d] sm:$0x1]
  %v1202 = vld [vmem:[%s0 + $0x2d] sm:$0x1]
  %v1203 = vld [vmem:[%s0 + $0x3d] sm:$0x1]
  %v1204 = vld [vmem:[%s0 + $0x4d] sm:$0x1]
  %v1205 = vld [vmem:[%s0 + $0x5d] sm:$0x1]
  %v1206 = vld [vmem:[%s0 + $0x6d] sm:$0x1]
  %v1207 = vld [vmem:[%s0 + $0x7d] sm:$0x1]
  %v1216 = vrot.slane %v1185, 7
  %v1217 = vsel %vm118, %v1216, %v1184
  %v1218 = vrot.slane %v1186, 6
  %v1219 = vsel %vm121, %v1218, %v1217
  %v1220 = vrot.slane %v1187, 5
  %v1221 = vsel %vm124, %v1220, %v1219
  %v1222 = vrot.slane %v1188, 4
  %v1223 = vsel %vm127, %v1222, %v1221
  %v1224 = vrot.slane %v1189, 3
  %v1225 = vsel %vm130, %v1224, %v1223
  %v1226 = vrot.slane %v1190, 2
  %v1227 = vsel %vm133, %v1226, %v1225
  %v1228 = vrot.slane %v1191, 1
  %v1229 = vsel %vm136, %v1228, %v1227
  %1231 = vmatpush.msra.mxu0 %v32
  %1232 = vmatpush.msra.mxu0 %v31
  %1233 = vmatpush.msra.mxu0 %v30
  %1234 = vmatpush.msra.mxu0 %v29
  %1235 = vmatpush.msra.mxu0 %v28
  %1236 = vmatpush.msra.mxu0 %v27
  %1237 = vmatpush.msra.mxu0 %v26
  %1238 = vmatpush.msra.mxu0 %v25
  %1239 = vmatpush.msra.mxu0 %v24
  %1240 = vmatpush.msra.mxu0 %v23
  %1241 = vmatpush.msra.mxu0 %v22
  %1242 = vmatpush.msra.mxu0 %v21
  %1243 = vmatpush.msra.mxu0 %v20
  %1244 = vmatpush.msra.mxu0 %v19
  %1245 = vmatpush.msra.mxu0 %v18
  %1246 = vmatpush.msra.mxu0 %v17
  %1247 = vmatmul.f32.gmra.mxu0 %v1229
  %v1248 = vpop.f32.mrf.mxu0
  %v1249 = vadd.f32 0.0, %v1248
  %1250 = vdwg.mxu0
  %v1252 = vrot.slane %v1249, 1
  %v1253 = vrot.slane %v1249, 2
  %v1254 = vrot.slane %v1249, 3
  %v1255 = vrot.slane %v1249, 4
  %v1256 = vrot.slane %v1249, 5
  %v1257 = vrot.slane %v1249, 6
  %v1258 = vrot.slane %v1249, 7
  %v1267 = vadd.f32 %v1200, %v1249
  %v1268 = vadd.f32 %v1201, %v1252
  %v1269 = vadd.f32 %v1202, %v1253
  %v1270 = vadd.f32 %v1203, %v1254
  %v1271 = vadd.f32 %v1204, %v1255
  %v1272 = vadd.f32 %v1205, %v1256
  %v1273 = vadd.f32 %v1206, %v1257
  %v1274 = vadd.f32 %v1207, %v1258
  %v1275 = vtanh.pop %v1267
  %v1276 = vtanh.pop %v1268
  %v1277 = vtanh.pop %v1269
  %v1278 = vtanh.pop %v1270
  %v1279 = vtanh.pop %v1271
  %v1280 = vtanh.pop %v1272
  %v1281 = vtanh.pop %v1273
  %v1282 = vtanh.pop %v1274
  %1283 = vst [vmem:[%s2 + $0xd] sm:$0x1] %v1275
  %1284 = vst [vmem:[%s2 + $0x1d] sm:$0x1] %v1276
  %1285 = vst [vmem:[%s2 + $0x2d] sm:$0x1] %v1277
  %1286 = vst [vmem:[%s2 + $0x3d] sm:$0x1] %v1278
  %1287 = vst [vmem:[%s2 + $0x4d] sm:$0x1] %v1279
  %1288 = vst [vmem:[%s2 + $0x5d] sm:$0x1] %v1280
  %1289 = vst [vmem:[%s2 + $0x6d] sm:$0x1] %v1281
  %1290 = vst [vmem:[%s2 + $0x7d] sm:$0x1] %v1282
  %v1291 = vld [vmem:[%s0 + $0xe] sm:$0x1]
  %v1292 = vld [vmem:[%s0 + $0x1e] sm:$0x1]
  %v1293 = vld [vmem:[%s0 + $0x2e] sm:$0x1]
  %v1294 = vld [vmem:[%s0 + $0x3e] sm:$0x1]
  %v1295 = vld [vmem:[%s0 + $0x4e] sm:$0x1]
  %v1296 = vld [vmem:[%s0 + $0x5e] sm:$0x1]
  %v1297 = vld [vmem:[%s0 + $0x6e] sm:$0x1]
  %v1298 = vld [vmem:[%s0 + $0x7e] sm:$0x1]
  %v1307 = vrot.slane %v1276, 7
  %v1308 = vsel %vm118, %v1307, %v1275
  %v1309 = vrot.slane %v1277, 6
  %v1310 = vsel %vm121, %v1309, %v1308
  %v1311 = vrot.slane %v1278, 5
  %v1312 = vsel %vm124, %v1311, %v1310
  %v1313 = vrot.slane %v1279, 4
  %v1314 = vsel %vm127, %v1313, %v1312
  %v1315 = vrot.slane %v1280, 3
  %v1316 = vsel %vm130, %v1315, %v1314
  %v1317 = vrot.slane %v1281, 2
  %v1318 = vsel %vm133, %v1317, %v1316
  %v1319 = vrot.slane %v1282, 1
  %v1320 = vsel %vm136, %v1319, %v1318
  %1322 = vmatpush.msra.mxu0 %v32
  %1323 = vmatpush.msra.mxu0 %v31
  %1324 = vmatpush.msra.mxu0 %v30
  %1325 = vmatpush.msra.mxu0 %v29
  %1326 = vmatpush.msra.mxu0 %v28
  %1327 = vmatpush.msra.mxu0 %v27
  %1328 = vmatpush.msra.mxu0 %v26
  %1329 = vmatpush.msra.mxu0 %v25
  %1330 = vmatpush.msra.mxu0 %v24
  %1331 = vmatpush.msra.mxu0 %v23
  %1332 = vmatpush.msra.mxu0 %v22
  %1333 = vmatpush.msra.mxu0 %v21
  %1334 = vmatpush.msra.mxu0 %v20
  %1335 = vmatpush.msra.mxu0 %v19
  %1336 = vmatpush.msra.mxu0 %v18
  %1337 = vmatpush.msra.mxu0 %v17
  %1338 = vmatmul.f32.gmra.mxu0 %v1320
  %v1339 = vpop.f32.mrf.mxu0
  %v1340 = vadd.f32 0.0, %v1339
  %1341 = vdwg.mxu0
  %v1343 = vrot.slane %v1340, 1
  %v1344 = vrot.slane %v1340, 2
  %v1345 = vrot.slane %v1340, 3
  %v1346 = vrot.slane %v1340, 4
  %v1347 = vrot.slane %v1340, 5
  %v1348 = vrot.slane %v1340, 6
  %v1349 = vrot.slane %v1340, 7
  %v1358 = vadd.f32 %v1291, %v1340
  %v1359 = vadd.f32 %v1292, %v1343
  %v1360 = vadd.f32 %v1293, %v1344
  %v1361 = vadd.f32 %v1294, %v1345
  %v1362 = vadd.f32 %v1295, %v1346
  %v1363 = vadd.f32 %v1296, %v1347
  %v1364 = vadd.f32 %v1297, %v1348
  %v1365 = vadd.f32 %v1298, %v1349
  %v1366 = vtanh.pop %v1358
  %v1367 = vtanh.pop %v1359
  %v1368 = vtanh.pop %v1360
  %v1369 = vtanh.pop %v1361
  %v1370 = vtanh.pop %v1362
  %v1371 = vtanh.pop %v1363
  %v1372 = vtanh.pop %v1364
  %v1373 = vtanh.pop %v1365
  %1374 = vst [vmem:[%s2 + $0xe] sm:$0x1] %v1366
  %1375 = vst [vmem:[%s2 + $0x1e] sm:$0x1] %v1367
  %1376 = vst [vmem:[%s2 + $0x2e] sm:$0x1] %v1368
  %1377 = vst [vmem:[%s2 + $0x3e] sm:$0x1] %v1369
  %1378 = vst [vmem:[%s2 + $0x4e] sm:$0x1] %v1370
  %1379 = vst [vmem:[%s2 + $0x5e] sm:$0x1] %v1371
  %1380 = vst [vmem:[%s2 + $0x6e] sm:$0x1] %v1372
  %1381 = vst [vmem:[%s2 + $0x7e] sm:$0x1] %v1373
  %v1382 = vld [vmem:[%s0 + $0xf] sm:$0x1]
  %v1383 = vld [vmem:[%s0 + $0x1f] sm:$0x1]
  %v1384 = vld [vmem:[%s0 + $0x2f] sm:$0x1]
  %v1385 = vld [vmem:[%s0 + $0x3f] sm:$0x1]
  %v1386 = vld [vmem:[%s0 + $0x4f] sm:$0x1]
  %v1387 = vld [vmem:[%s0 + $0x5f] sm:$0x1]
  %v1388 = vld [vmem:[%s0 + $0x6f] sm:$0x1]
  %v1389 = vld [vmem:[%s0 + $0x7f] sm:$0x1]
  %v1398 = vrot.slane %v1367, 7
  %v1399 = vsel %vm118, %v1398, %v1366
  %v1400 = vrot.slane %v1368, 6
  %v1401 = vsel %vm121, %v1400, %v1399
  %v1402 = vrot.slane %v1369, 5
  %v1403 = vsel %vm124, %v1402, %v1401
  %v1404 = vrot.slane %v1370, 4
  %v1405 = vsel %vm127, %v1404, %v1403
  %v1406 = vrot.slane %v1371, 3
  %v1407 = vsel %vm130, %v1406, %v1405
  %v1408 = vrot.slane %v1372, 2
  %v1409 = vsel %vm133, %v1408, %v1407
  %v1410 = vrot.slane %v1373, 1
  %v1411 = vsel %vm136, %v1410, %v1409
  %1413 = vmatpush.msra.mxu0 %v32
  %1414 = vmatpush.msra.mxu0 %v31
  %1415 = vmatpush.msra.mxu0 %v30
  %1416 = vmatpush.msra.mxu0 %v29
  %1417 = vmatpush.msra.mxu0 %v28
  %1418 = vmatpush.msra.mxu0 %v27
  %1419 = vmatpush.msra.mxu0 %v26
  %1420 = vmatpush.msra.mxu0 %v25
  %1421 = vmatpush.msra.mxu0 %v24
  %1422 = vmatpush.msra.mxu0 %v23
  %1423 = vmatpush.msra.mxu0 %v22
  %1424 = vmatpush.msra.mxu0 %v21
  %1425 = vmatpush.msra.mxu0 %v20
  %1426 = vmatpush.msra.mxu0 %v19
  %1427 = vmatpush.msra.mxu0 %v18
  %1428 = vmatpush.msra.mxu0 %v17
  %1429 = vmatmul.f32.gmra.mxu0 %v1411
  %v1430 = vpop.f32.mrf.mxu0
  %v1431 = vadd.f32 0.0, %v1430
  %1432 = vdwg.mxu0
  %v1434 = vrot.slane %v1431, 1
  %v1435 = vrot.slane %v1431, 2
  %v1436 = vrot.slane %v1431, 3
  %v1437 = vrot.slane %v1431, 4
  %v1438 = vrot.slane %v1431, 5
  %v1439 = vrot.slane %v1431, 6
  %v1440 = vrot.slane %v1431, 7
  %v1449 = vadd.f32 %v1382, %v1431
  %v1450 = vadd.f32 %v1383, %v1434
  %v1451 = vadd.f32 %v1384, %v1435
  %v1452 = vadd.f32 %v1385, %v1436
  %v1453 = vadd.f32 %v1386, %v1437
  %v1454 = vadd.f32 %v1387, %v1438
  %v1455 = vadd.f32 %v1388, %v1439
  %v1456 = vadd.f32 %v1389, %v1440
  %v1457 = vtanh.pop %v1449
  %v1458 = vtanh.pop %v1450
  %v1459 = vtanh.pop %v1451
  %v1460 = vtanh.pop %v1452
  %v1461 = vtanh.pop %v1453
  %v1462 = vtanh.pop %v1454
  %v1463 = vtanh.pop %v1455
  %v1464 = vtanh.pop %v1456
  %1465 = vst [vmem:[%s2 + $0xf] sm:$0x1] %v1457
  %1466 = vst [vmem:[%s2 + $0x1f] sm:$0x1] %v1458
  %1467 = vst [vmem:[%s2 + $0x2f] sm:$0x1] %v1459
  %1468 = vst [vmem:[%s2 + $0x3f] sm:$0x1] %v1460
  %1469 = vst [vmem:[%s2 + $0x4f] sm:$0x1] %v1461
  %1470 = vst [vmem:[%s2 + $0x5f] sm:$0x1] %v1462
  %1471 = vst [vmem:[%s2 + $0x6f] sm:$0x1] %v1463
  %1472 = vst [vmem:[%s2 + $0x7f] sm:$0x1] %v1464
  %v1481 = vrot.slane %v1458, 7
  %v1482 = vsel %vm118, %v1481, %v1457
  %v1483 = vrot.slane %v1459, 6
  %v1484 = vsel %vm121, %v1483, %v1482
  %v1485 = vrot.slane %v1460, 5
  %v1486 = vsel %vm124, %v1485, %v1484
  %v1487 = vrot.slane %v1461, 4
  %v1488 = vsel %vm127, %v1487, %v1486
  %v1489 = vrot.slane %v1462, 3
  %v1490 = vsel %vm130, %v1489, %v1488
  %v1491 = vrot.slane %v1463, 2
  %v1492 = vsel %vm133, %v1491, %v1490
  %v1493 = vrot.slane %v1464, 1
  %v1494 = vsel %vm136, %v1493, %v1492
  %1496 = vst [vmem:[#allocation2] sm:$0xff] %v1494
  // Predicated region
  $region14: #{rnn_base_forward.1} parent=0 // pred_check
    _
  $region15: #{rnn_base_forward.1} parent=0 // pred_check_branch
    %1498 = sbr.rel (0) target = $region17
  $region16: #{rnn_base_forward.1} parent=0 // pred_region
    _
  $region17: #{rnn_base_forward.1} parent=0 // pred_fallthru
    _
  // Predicated region
  $region18: #{rnn_base_forward.1} parent=0 // pred_check
    _
  $region19: #{rnn_base_forward.1} parent=0 // pred_check_branch
    %1500 = sbr.rel (0) target = $region21
  $region20: #{rnn_base_forward.1} parent=0 // pred_region
    _
  $region21: #{rnn_base_forward.1} parent=0 // pred_fallthru
    _

</llo_original>
